<compile_context>
chip_gen: v7x
topology: tpu7x:2x2x1
jax: 0.10.0
libtpu: 0.0.40
codegen_flags: <defaults>
</compile_context>

<pallas_src>
import functools

import jax
import jax.numpy as jnp
from jax.experimental import pallas as pl
from jax.experimental.pallas import tpu as pltpu

BN_EPS = 1e-5


def bottleneck_kernel(x_ref, w1_ref, w2_ref, w3_ref, gb_ref, mask_ref, o_ref,
                      *, n, h, w, width, cout):
    P = n * h * w
    inv_p = 1.0 / float(P)

    def bn(y, g, b, relu):
        # PyTorch training-mode BN over (N,H,W) == the lane axis here.
        # One fused cross-lane reduce for sum and sum-of-squares.
        c = y.shape[0]
        stats = jnp.sum(jnp.concatenate([y, y * y], axis=0),
                        axis=1, keepdims=True)                # (2c, 1)
        m = stats[:c] * inv_p
        v = jnp.maximum(stats[c:] * inv_p - m * m, 0.0)       # biased var, clamped
        scale = g * jax.lax.rsqrt(v + BN_EPS)                 # (c, 1)  (EUP rsqrt)
        shift = b - m * scale
        yn = y * scale + shift                                 # single FMA per elem
        return jnp.maximum(yn, 0.0) if relu else yn

    # ---- conv1 (1x1) + bn1 + relu ------------------------------------------
    # Feed the MXU straight from x_ref (short live range for x).
    y = jnp.dot(w1_ref[...], x_ref[...], preferred_element_type=jnp.float32)
    y = bn(y, gb_ref[:width, 0:1], gb_ref[:width, 1:2], relu=True)

    # ---- conv2 (3x3, stride 1, pad 1) + bn2 + relu -------------------------
    # Streamed shift-based im2col on the flattened (n*h*w) lane axis:
    # one rolled tap live at a time, accumulated through 9 small dots.
    # TODO(synk): cast tap/weights to bf16 (preferred_element_type=f32) at
    # production widths; kept f32 here to match the reference tolerance.
    acc = None
    for k in range(9):
        dh, dw = k // 3 - 1, k % 3 - 1
        delta = dh * w + dw
        tap = y if delta == 0 else pltpu.roll(y, shift=(-delta) % P, axis=1)
        if k != 4:                                    # center tap needs no mask
            tap = tap * mask_ref[k:k + 1, :]          # precomputed 0/1 boundary mask
        part = jnp.dot(w2_ref[k], tap, preferred_element_type=jnp.float32)
        acc = part if acc is None else acc + part
    y = bn(acc, gb_ref[:width, 2:3], gb_ref[:width, 3:4], relu=True)

    # ---- conv3 (1x1) + bn3 + residual add + relu ---------------------------
    y = jnp.dot(w3_ref[...], y, preferred_element_type=jnp.float32)
    y = bn(y, gb_ref[:cout, 4:5], gb_ref[:cout, 5:6], relu=False)
    o_ref[...] = jnp.maximum(y + x_ref[...], 0.0).astype(o_ref.dtype)


def bottleneck_forward(x, w1, w2, w3, g1, b1, g2, b2, g3, b3):
    """x: (N,H,W,Cin) NHWC.  Weights in PyTorch-style layouts:
       w1 (width,Cin), w2 (width,width,3,3), w3 (Cout,width), gammas/betas (C,)."""
    N, H, W, Cin = x.shape
    width = w1.shape[0]
    Cout = w3.shape[0]
    P = N * H * W
    cmax = max(width, Cout)

    # Layout plumbing (wrapper side): channels -> sublanes, spatial -> lanes.
    # TODO(synk): at production sizes fold these transposes into the kernel /
    # BlockSpec index_maps to avoid the extra HBM round-trips.
    x_t = jnp.transpose(x, (3, 0, 1, 2)).reshape(Cin, P)

    # Per-tap 3x3 weights: w2_k[k, o, i] = w2[o, i, kh, kw], k = kh*3 + kw.
    w2_k = jnp.transpose(w2, (2, 3, 0, 1)).reshape(9, width, width)

    # Pack the six gamma/beta vectors into one (cmax, 6) block.
    def _pad(v):
        return jnp.pad(v, (0, cmax - v.shape[0]))
    gb = jnp.stack([_pad(g1), _pad(b1), _pad(g2), _pad(b2), _pad(g3), _pad(b3)],
                   axis=1)                                     # (cmax, 6)

    # Precomputed zero-padding boundary masks for the 8 shifted taps (row 4
    # is the unshifted center and is all-ones / unused).
    pos = jnp.arange(P, dtype=jnp.int32)
    wi = pos % W
    hi = (pos // W) % H
    masks = []
    for k in range(9):
        dh, dw = k // 3 - 1, k % 3 - 1
        valid = ((hi + dh >= 0) & (hi + dh < H) &
                 (wi + dw >= 0) & (wi + dw < W))
        masks.append(valid.astype(jnp.float32))
    mask = jnp.stack(masks, axis=0)                            # (9, P)

    args = (x_t, w1, w2_k, w3, gb, mask)

    def full_spec(shape):
        nd = len(shape)
        return pl.BlockSpec(shape, lambda i, nd=nd: (0,) * nd)

    kernel = functools.partial(bottleneck_kernel,
                               n=N, h=H, w=W, width=width, cout=Cout)
    out_t = pl.pallas_call(
        kernel,
        out_shape=jax.ShapeDtypeStruct((Cout, P), x.dtype),    # lane-dense store
        grid_spec=pltpu.PrefetchScalarGridSpec(
            num_scalar_prefetch=0,
            grid=(1,),
            in_specs=[full_spec(a.shape) for a in args],
            out_specs=full_spec((Cout, P)),
        ),
        compiler_params=pltpu.CompilerParams(
            dimension_semantics=("arbitrary",)),
    )(*args)

    return jnp.transpose(out_t.reshape(Cout, N, H, W), (1, 2, 3, 0))


def reference_forward(x, w1, w2, w3, g1, b1, g2, b2, g3, b3):
    """Plain-JAX reference (same math, HIGHEST matmul precision, NHWC layout)."""
    N, H, W, Cin = x.shape
    width = w1.shape[0]
    hp = jax.lax.Precision.HIGHEST
    xf = x.reshape(N * H * W, Cin).astype(jnp.float32)

    def bn(y, g, b, relu):
        m = jnp.mean(y, axis=0, keepdims=True)
        v = jnp.mean((y - m) ** 2, axis=0, keepdims=True)      # biased variance
        yn = (y - m) * jax.lax.rsqrt(v + BN_EPS) * g[None, :] + b[None, :]
        return jnp.maximum(yn, 0.0) if relu else yn

    y = jnp.dot(xf, w1.T, precision=hp)
    y = bn(y, g1, b1, True)

    y = y.reshape(N, H, W, width)
    padded = jnp.pad(y, ((0, 0), (1, 1), (1, 1), (0, 0)))
    acc = jnp.zeros((N * H * W, width), jnp.float32)
    for kh in range(3):
        for kw in range(3):
            patch = padded[:, kh:kh + H, kw:kw + W, :].reshape(N * H * W, width)
            acc = acc + jnp.dot(patch, w2[:, :, kh, kw].T, precision=hp)
    y = bn(acc, g2, b2, True)

    y = jnp.dot(y, w3.T, precision=hp)
    y = bn(y, g3, b3, False)
    y = jnp.maximum(y + xf, 0.0)
    return y.reshape(N, H, W, -1)


if __name__ == "__main__":
    # Module config: in_channel = out_channel * expansion so the residual add
    # is valid with downsample=None; groups=1, width_per_group=64 -> width=out_channel.
    out_channel = 4
    expansion = 4
    in_channel = out_channel * expansion     # 16
    width = out_channel                      # 4
    N, H, W = 2, 16, 16

    key = jax.random.PRNGKey(0)
    ks = jax.random.split(key, 10)

    x = jax.random.normal(ks[0], (N, H, W, in_channel), jnp.float32)

    w1 = 0.2 * jax.random.normal(ks[1], (width, in_channel), jnp.float32)
    w2 = 0.2 * jax.random.normal(ks[2], (width, width, 3, 3), jnp.float32)
    w3 = 0.2 * jax.random.normal(ks[3], (in_channel, width), jnp.float32)

    g1 = 1.0 + 0.1 * jax.random.normal(ks[4], (width,), jnp.float32)
    b1 = 0.1 * jax.random.normal(ks[5], (width,), jnp.float32)
    g2 = 1.0 + 0.1 * jax.random.normal(ks[6], (width,), jnp.float32)
    b2 = 0.1 * jax.random.normal(ks[7], (width,), jnp.float32)
    g3 = 1.0 + 0.1 * jax.random.normal(ks[8], (in_channel,), jnp.float32)
    b3 = 0.1 * jax.random.normal(ks[9], (in_channel,), jnp.float32)

    out = bottleneck_forward(x, w1, w2, w3, g1, b1, g2, b2, g3, b3)
    out = jax.block_until_ready(out)

    ref = reference_forward(x, w1, w2, w3, g1, b1, g2, b2, g3, b3)
    assert out.shape == (N, H, W, in_channel)
    assert bool(jnp.all(jnp.isfinite(out)))
    assert bool(jnp.allclose(out, ref, rtol=1e-2, atol=1e-2)), "mismatch vs reference"

    print("KERNEL_OK")
</pallas_src>

<mosaic_0001>
module attributes {stable_mosaic.version = 11 : i64} {
  func.func @bottleneck_kernel(%arg0: i32, %arg1: memref<16x512xf32, #tpu.memory_space<vmem>>, %arg2: memref<4x16xf32, #tpu.memory_space<vmem>>, %arg3: memref<9x4x4xf32, #tpu.memory_space<vmem>>, %arg4: memref<16x4xf32, #tpu.memory_space<vmem>>, %arg5: memref<16x6xf32, #tpu.memory_space<vmem>>, %arg6: memref<9x512xf32, #tpu.memory_space<vmem>>, %arg7: memref<16x512xf32, #tpu.memory_space<vmem>>) attributes {dimension_semantics = [#tpu.dimension_semantics<arbitrary>], iteration_bounds = array<i64: 1>, scalar_prefetch = 0 : i64, scratch_operands = 0 : i64, tpu.core_type = #tpu.core_type<tc>, window_params = [{pipeline_mode = #tpu.pipeline_mode<synchronous>, transform_indices = @transform_0, window_bounds = array<i64: 16, 512>}, {pipeline_mode = #tpu.pipeline_mode<synchronous>, transform_indices = @transform_1, window_bounds = array<i64: 4, 16>}, {pipeline_mode = #tpu.pipeline_mode<synchronous>, transform_indices = @transform_2, window_bounds = array<i64: 9, 4, 4>}, {pipeline_mode = #tpu.pipeline_mode<synchronous>, transform_indices = @transform_3, window_bounds = array<i64: 16, 4>}, {pipeline_mode = #tpu.pipeline_mode<synchronous>, transform_indices = @transform_4, window_bounds = array<i64: 16, 6>}, {pipeline_mode = #tpu.pipeline_mode<synchronous>, transform_indices = @transform_5, window_bounds = array<i64: 9, 512>}, {pipeline_mode = #tpu.pipeline_mode<synchronous>, transform_indices = @transform_6, window_bounds = array<i64: 16, 512>}]} {
    %c0 = arith.constant 0 : index
    %c0_0 = arith.constant 0 : index
    %0 = vector.load %arg2[%c0, %c0_0] : memref<4x16xf32, #tpu.memory_space<vmem>>, vector<4x16xf32>
    %c0_1 = arith.constant 0 : index
    %c0_2 = arith.constant 0 : index
    %1 = vector.load %arg1[%c0_1, %c0_2] : memref<16x512xf32, #tpu.memory_space<vmem>>, vector<16x512xf32>
    %cst = arith.constant dense<0.000000e+00> : vector<4x512xf32>
    %2 = tpu.matmul %0, %1, %cst {dimension_numbers = #tpu.dot_dimension_numbers<[1], [0], [0], [1], [0, 0, 1, 1], [], []>} : vector<4x16xf32>, vector<16x512xf32>, vector<4x512xf32> -> vector<4x512xf32>
    %c0_3 = arith.constant 0 : index
    %c0_4 = arith.constant 0 : index
    %3 = vector.load %arg5[%c0_3, %c0_4] : memref<16x6xf32, #tpu.memory_space<vmem>>, vector<4x1xf32>
    %c0_5 = arith.constant 0 : index
    %c1 = arith.constant 1 : index
    %4 = vector.load %arg5[%c0_5, %c1] : memref<16x6xf32, #tpu.memory_space<vmem>>, vector<4x1xf32>
    %5 = arith.mulf %2, %2 : vector<4x512xf32>
    %6 = tpu.concatenate %2, %5 in 0 : vector<4x512xf32>, vector<4x512xf32> -> vector<8x512xf32>
    %cst_6 = arith.constant dense<0.000000e+00> : vector<8xf32>
    %7 = vector.multi_reduction <add>, %6, %cst_6 [1] : vector<8x512xf32> to vector<8xf32>
    %8 = vector.shape_cast %7 : vector<8xf32> to vector<8x1xf32>
    %9 = vector.extract_strided_slice %8 {offsets = [0, 0], sizes = [4, 1], strides = [1, 1]} : vector<8x1xf32> to vector<4x1xf32>
    %cst_7 = arith.constant 0.001953125 : f32
    %10 = vector.broadcast %cst_7 : f32 to vector<4x1xf32>
    %11 = arith.mulf %9, %10 : vector<4x1xf32>
    %12 = vector.extract_strided_slice %8 {offsets = [4, 0], sizes = [4, 1], strides = [1, 1]} : vector<8x1xf32> to vector<4x1xf32>
    %cst_8 = arith.constant 0.001953125 : f32
    %13 = vector.broadcast %cst_8 : f32 to vector<4x1xf32>
    %14 = arith.mulf %12, %13 : vector<4x1xf32>
    %15 = arith.mulf %11, %11 : vector<4x1xf32>
    %16 = arith.subf %14, %15 : vector<4x1xf32>
    %cst_9 = arith.constant 0.000000e+00 : f32
    %17 = vector.broadcast %cst_9 : f32 to vector<4x1xf32>
    %18 = arith.maximumf %16, %17 : vector<4x1xf32>
    %cst_10 = arith.constant 9.99999974E-6 : f32
    %19 = vector.broadcast %cst_10 : f32 to vector<4x1xf32>
    %20 = arith.addf %18, %19 : vector<4x1xf32>
    %21 = math.rsqrt %20 : vector<4x1xf32>
    %22 = arith.mulf %3, %21 : vector<4x1xf32>
    %23 = arith.mulf %11, %22 : vector<4x1xf32>
    %24 = arith.subf %4, %23 : vector<4x1xf32>
    %25 = vector.broadcast %22 : vector<4x1xf32> to vector<4x512xf32>
    %26 = arith.mulf %2, %25 : vector<4x512xf32>
    %27 = vector.broadcast %24 : vector<4x1xf32> to vector<4x512xf32>
    %28 = arith.addf %26, %27 : vector<4x512xf32>
    %cst_11 = arith.constant 0.000000e+00 : f32
    %29 = vector.broadcast %cst_11 : f32 to vector<4x512xf32>
    %30 = arith.maximumf %28, %29 : vector<4x512xf32>
    %c17_i32 = arith.constant 17 : i32
    %31 = tpu.dynamic_rotate %30 by %c17_i32 dim 1 : vector<4x512xf32>, i32 -> vector<4x512xf32>
    %c0_12 = arith.constant 0 : index
    %c0_13 = arith.constant 0 : index
    %32 = vector.load %arg6[%c0_12, %c0_13] : memref<9x512xf32, #tpu.memory_space<vmem>>, vector<1x512xf32>
    %33 = vector.broadcast %32 : vector<1x512xf32> to vector<4x512xf32>
    %34 = arith.mulf %31, %33 : vector<4x512xf32>
    %c0_14 = arith.constant 0 : index
    %c0_15 = arith.constant 0 : index
    %c0_16 = arith.constant 0 : index
    %35 = vector.load %arg3[%c0_14, %c0_15, %c0_16] : memref<9x4x4xf32, #tpu.memory_space<vmem>>, vector<1x4x4xf32>
    %36 = vector.shape_cast %35 : vector<1x4x4xf32> to vector<4x4xf32>
    %cst_17 = arith.constant dense<0.000000e+00> : vector<4x512xf32>
    %37 = tpu.matmul %36, %34, %cst_17 {dimension_numbers = #tpu.dot_dimension_numbers<[1], [0], [0], [1], [0, 0, 1, 1], [], []>} : vector<4x4xf32>, vector<4x512xf32>, vector<4x512xf32> -> vector<4x512xf32>
    %c16_i32 = arith.constant 16 : i32
    %38 = tpu.dynamic_rotate %30 by %c16_i32 dim 1 : vector<4x512xf32>, i32 -> vector<4x512xf32>
    %c1_18 = arith.constant 1 : index
    %c0_19 = arith.constant 0 : index
    %39 = vector.load %arg6[%c1_18, %c0_19] : memref<9x512xf32, #tpu.memory_space<vmem>>, vector<1x512xf32>
    %40 = vector.broadcast %39 : vector<1x512xf32> to vector<4x512xf32>
    %41 = arith.mulf %38, %40 : vector<4x512xf32>
    %c1_20 = arith.constant 1 : index
    %c0_21 = arith.constant 0 : index
    %c0_22 = arith.constant 0 : index
    %42 = vector.load %arg3[%c1_20, %c0_21, %c0_22] : memref<9x4x4xf32, #tpu.memory_space<vmem>>, vector<1x4x4xf32>
    %43 = vector.shape_cast %42 : vector<1x4x4xf32> to vector<4x4xf32>
    %cst_23 = arith.constant dense<0.000000e+00> : vector<4x512xf32>
    %44 = tpu.matmul %43, %41, %cst_23 {dimension_numbers = #tpu.dot_dimension_numbers<[1], [0], [0], [1], [0, 0, 1, 1], [], []>} : vector<4x4xf32>, vector<4x512xf32>, vector<4x512xf32> -> vector<4x512xf32>
    %45 = arith.addf %37, %44 : vector<4x512xf32>
    %c15_i32 = arith.constant 15 : i32
    %46 = tpu.dynamic_rotate %30 by %c15_i32 dim 1 : vector<4x512xf32>, i32 -> vector<4x512xf32>
    %c2 = arith.constant 2 : index
    %c0_24 = arith.constant 0 : index
    %47 = vector.load %arg6[%c2, %c0_24] : memref<9x512xf32, #tpu.memory_space<vmem>>, vector<1x512xf32>
    %48 = vector.broadcast %47 : vector<1x512xf32> to vector<4x512xf32>
    %49 = arith.mulf %46, %48 : vector<4x512xf32>
    %c2_25 = arith.constant 2 : index
    %c0_26 = arith.constant 0 : index
    %c0_27 = arith.constant 0 : index
    %50 = vector.load %arg3[%c2_25, %c0_26, %c0_27] : memref<9x4x4xf32, #tpu.memory_space<vmem>>, vector<1x4x4xf32>
    %51 = vector.shape_cast %50 : vector<1x4x4xf32> to vector<4x4xf32>
    %cst_28 = arith.constant dense<0.000000e+00> : vector<4x512xf32>
    %52 = tpu.matmul %51, %49, %cst_28 {dimension_numbers = #tpu.dot_dimension_numbers<[1], [0], [0], [1], [0, 0, 1, 1], [], []>} : vector<4x4xf32>, vector<4x512xf32>, vector<4x512xf32> -> vector<4x512xf32>
    %53 = arith.addf %45, %52 : vector<4x512xf32>
    %c1_i32 = arith.constant 1 : i32
    %54 = tpu.dynamic_rotate %30 by %c1_i32 dim 1 : vector<4x512xf32>, i32 -> vector<4x512xf32>
    %c3 = arith.constant 3 : index
    %c0_29 = arith.constant 0 : index
    %55 = vector.load %arg6[%c3, %c0_29] : memref<9x512xf32, #tpu.memory_space<vmem>>, vector<1x512xf32>
    %56 = vector.broadcast %55 : vector<1x512xf32> to vector<4x512xf32>
    %57 = arith.mulf %54, %56 : vector<4x512xf32>
    %c3_30 = arith.constant 3 : index
    %c0_31 = arith.constant 0 : index
    %c0_32 = arith.constant 0 : index
    %58 = vector.load %arg3[%c3_30, %c0_31, %c0_32] : memref<9x4x4xf32, #tpu.memory_space<vmem>>, vector<1x4x4xf32>
    %59 = vector.shape_cast %58 : vector<1x4x4xf32> to vector<4x4xf32>
    %cst_33 = arith.constant dense<0.000000e+00> : vector<4x512xf32>
    %60 = tpu.matmul %59, %57, %cst_33 {dimension_numbers = #tpu.dot_dimension_numbers<[1], [0], [0], [1], [0, 0, 1, 1], [], []>} : vector<4x4xf32>, vector<4x512xf32>, vector<4x512xf32> -> vector<4x512xf32>
    %61 = arith.addf %53, %60 : vector<4x512xf32>
    %c4 = arith.constant 4 : index
    %c0_34 = arith.constant 0 : index
    %c0_35 = arith.constant 0 : index
    %62 = vector.load %arg3[%c4, %c0_34, %c0_35] : memref<9x4x4xf32, #tpu.memory_space<vmem>>, vector<1x4x4xf32>
    %63 = vector.shape_cast %62 : vector<1x4x4xf32> to vector<4x4xf32>
    %cst_36 = arith.constant dense<0.000000e+00> : vector<4x512xf32>
    %64 = tpu.matmul %63, %30, %cst_36 {dimension_numbers = #tpu.dot_dimension_numbers<[1], [0], [0], [1], [0, 0, 1, 1], [], []>} : vector<4x4xf32>, vector<4x512xf32>, vector<4x512xf32> -> vector<4x512xf32>
    %65 = arith.addf %61, %64 : vector<4x512xf32>
    %c511_i32 = arith.constant 511 : i32
    %66 = tpu.dynamic_rotate %30 by %c511_i32 dim 1 : vector<4x512xf32>, i32 -> vector<4x512xf32>
    %c5 = arith.constant 5 : index
    %c0_37 = arith.constant 0 : index
    %67 = vector.load %arg6[%c5, %c0_37] : memref<9x512xf32, #tpu.memory_space<vmem>>, vector<1x512xf32>
    %68 = vector.broadcast %67 : vector<1x512xf32> to vector<4x512xf32>
    %69 = arith.mulf %66, %68 : vector<4x512xf32>
    %c5_38 = arith.constant 5 : index
    %c0_39 = arith.constant 0 : index
    %c0_40 = arith.constant 0 : index
    %70 = vector.load %arg3[%c5_38, %c0_39, %c0_40] : memref<9x4x4xf32, #tpu.memory_space<vmem>>, vector<1x4x4xf32>
    %71 = vector.shape_cast %70 : vector<1x4x4xf32> to vector<4x4xf32>
    %cst_41 = arith.constant dense<0.000000e+00> : vector<4x512xf32>
    %72 = tpu.matmul %71, %69, %cst_41 {dimension_numbers = #tpu.dot_dimension_numbers<[1], [0], [0], [1], [0, 0, 1, 1], [], []>} : vector<4x4xf32>, vector<4x512xf32>, vector<4x512xf32> -> vector<4x512xf32>
    %73 = arith.addf %65, %72 : vector<4x512xf32>
    %c497_i32 = arith.constant 497 : i32
    %74 = tpu.dynamic_rotate %30 by %c497_i32 dim 1 : vector<4x512xf32>, i32 -> vector<4x512xf32>
    %c6 = arith.constant 6 : index
    %c0_42 = arith.constant 0 : index
    %75 = vector.load %arg6[%c6, %c0_42] : memref<9x512xf32, #tpu.memory_space<vmem>>, vector<1x512xf32>
    %76 = vector.broadcast %75 : vector<1x512xf32> to vector<4x512xf32>
    %77 = arith.mulf %74, %76 : vector<4x512xf32>
    %c6_43 = arith.constant 6 : index
    %c0_44 = arith.constant 0 : index
    %c0_45 = arith.constant 0 : index
    %78 = vector.load %arg3[%c6_43, %c0_44, %c0_45] : memref<9x4x4xf32, #tpu.memory_space<vmem>>, vector<1x4x4xf32>
    %79 = vector.shape_cast %78 : vector<1x4x4xf32> to vector<4x4xf32>
    %cst_46 = arith.constant dense<0.000000e+00> : vector<4x512xf32>
    %80 = tpu.matmul %79, %77, %cst_46 {dimension_numbers = #tpu.dot_dimension_numbers<[1], [0], [0], [1], [0, 0, 1, 1], [], []>} : vector<4x4xf32>, vector<4x512xf32>, vector<4x512xf32> -> vector<4x512xf32>
    %81 = arith.addf %73, %80 : vector<4x512xf32>
    %c496_i32 = arith.constant 496 : i32
    %82 = tpu.dynamic_rotate %30 by %c496_i32 dim 1 : vector<4x512xf32>, i32 -> vector<4x512xf32>
    %c7 = arith.constant 7 : index
    %c0_47 = arith.constant 0 : index
    %83 = vector.load %arg6[%c7, %c0_47] : memref<9x512xf32, #tpu.memory_space<vmem>>, vector<1x512xf32>
    %84 = vector.broadcast %83 : vector<1x512xf32> to vector<4x512xf32>
    %85 = arith.mulf %82, %84 : vector<4x512xf32>
    %c7_48 = arith.constant 7 : index
    %c0_49 = arith.constant 0 : index
    %c0_50 = arith.constant 0 : index
    %86 = vector.load %arg3[%c7_48, %c0_49, %c0_50] : memref<9x4x4xf32, #tpu.memory_space<vmem>>, vector<1x4x4xf32>
    %87 = vector.shape_cast %86 : vector<1x4x4xf32> to vector<4x4xf32>
    %cst_51 = arith.constant dense<0.000000e+00> : vector<4x512xf32>
    %88 = tpu.matmul %87, %85, %cst_51 {dimension_numbers = #tpu.dot_dimension_numbers<[1], [0], [0], [1], [0, 0, 1, 1], [], []>} : vector<4x4xf32>, vector<4x512xf32>, vector<4x512xf32> -> vector<4x512xf32>
    %89 = arith.addf %81, %88 : vector<4x512xf32>
    %c495_i32 = arith.constant 495 : i32
    %90 = tpu.dynamic_rotate %30 by %c495_i32 dim 1 : vector<4x512xf32>, i32 -> vector<4x512xf32>
    %c8 = arith.constant 8 : index
    %c0_52 = arith.constant 0 : index
    %91 = vector.load %arg6[%c8, %c0_52] : memref<9x512xf32, #tpu.memory_space<vmem>>, vector<1x512xf32>
    %92 = vector.broadcast %91 : vector<1x512xf32> to vector<4x512xf32>
    %93 = arith.mulf %90, %92 : vector<4x512xf32>
    %c8_53 = arith.constant 8 : index
    %c0_54 = arith.constant 0 : index
    %c0_55 = arith.constant 0 : index
    %94 = vector.load %arg3[%c8_53, %c0_54, %c0_55] : memref<9x4x4xf32, #tpu.memory_space<vmem>>, vector<1x4x4xf32>
    %95 = vector.shape_cast %94 : vector<1x4x4xf32> to vector<4x4xf32>
    %cst_56 = arith.constant dense<0.000000e+00> : vector<4x512xf32>
    %96 = tpu.matmul %95, %93, %cst_56 {dimension_numbers = #tpu.dot_dimension_numbers<[1], [0], [0], [1], [0, 0, 1, 1], [], []>} : vector<4x4xf32>, vector<4x512xf32>, vector<4x512xf32> -> vector<4x512xf32>
    %97 = arith.addf %89, %96 : vector<4x512xf32>
    %c0_57 = arith.constant 0 : index
    %c2_58 = arith.constant 2 : index
    %98 = vector.load %arg5[%c0_57, %c2_58] : memref<16x6xf32, #tpu.memory_space<vmem>>, vector<4x1xf32>
    %c0_59 = arith.constant 0 : index
    %c3_60 = arith.constant 3 : index
    %99 = vector.load %arg5[%c0_59, %c3_60] : memref<16x6xf32, #tpu.memory_space<vmem>>, vector<4x1xf32>
    %100 = arith.mulf %97, %97 : vector<4x512xf32>
    %101 = tpu.concatenate %97, %100 in 0 : vector<4x512xf32>, vector<4x512xf32> -> vector<8x512xf32>
    %cst_61 = arith.constant dense<0.000000e+00> : vector<8xf32>
    %102 = vector.multi_reduction <add>, %101, %cst_61 [1] : vector<8x512xf32> to vector<8xf32>
    %103 = vector.shape_cast %102 : vector<8xf32> to vector<8x1xf32>
    %104 = vector.extract_strided_slice %103 {offsets = [0, 0], sizes = [4, 1], strides = [1, 1]} : vector<8x1xf32> to vector<4x1xf32>
    %cst_62 = arith.constant 0.001953125 : f32
    %105 = vector.broadcast %cst_62 : f32 to vector<4x1xf32>
    %106 = arith.mulf %104, %105 : vector<4x1xf32>
    %107 = vector.extract_strided_slice %103 {offsets = [4, 0], sizes = [4, 1], strides = [1, 1]} : vector<8x1xf32> to vector<4x1xf32>
    %cst_63 = arith.constant 0.001953125 : f32
    %108 = vector.broadcast %cst_63 : f32 to vector<4x1xf32>
    %109 = arith.mulf %107, %108 : vector<4x1xf32>
    %110 = arith.mulf %106, %106 : vector<4x1xf32>
    %111 = arith.subf %109, %110 : vector<4x1xf32>
    %cst_64 = arith.constant 0.000000e+00 : f32
    %112 = vector.broadcast %cst_64 : f32 to vector<4x1xf32>
    %113 = arith.maximumf %111, %112 : vector<4x1xf32>
    %cst_65 = arith.constant 9.99999974E-6 : f32
    %114 = vector.broadcast %cst_65 : f32 to vector<4x1xf32>
    %115 = arith.addf %113, %114 : vector<4x1xf32>
    %116 = math.rsqrt %115 : vector<4x1xf32>
    %117 = arith.mulf %98, %116 : vector<4x1xf32>
    %118 = arith.mulf %106, %117 : vector<4x1xf32>
    %119 = arith.subf %99, %118 : vector<4x1xf32>
    %120 = vector.broadcast %117 : vector<4x1xf32> to vector<4x512xf32>
    %121 = arith.mulf %97, %120 : vector<4x512xf32>
    %122 = vector.broadcast %119 : vector<4x1xf32> to vector<4x512xf32>
    %123 = arith.addf %121, %122 : vector<4x512xf32>
    %cst_66 = arith.constant 0.000000e+00 : f32
    %124 = vector.broadcast %cst_66 : f32 to vector<4x512xf32>
    %125 = arith.maximumf %123, %124 : vector<4x512xf32>
    %c0_67 = arith.constant 0 : index
    %c0_68 = arith.constant 0 : index
    %126 = vector.load %arg4[%c0_67, %c0_68] : memref<16x4xf32, #tpu.memory_space<vmem>>, vector<16x4xf32>
    %cst_69 = arith.constant dense<0.000000e+00> : vector<16x512xf32>
    %127 = tpu.matmul %126, %125, %cst_69 {dimension_numbers = #tpu.dot_dimension_numbers<[1], [0], [0], [1], [0, 0, 1, 1], [], []>} : vector<16x4xf32>, vector<4x512xf32>, vector<16x512xf32> -> vector<16x512xf32>
    %c0_70 = arith.constant 0 : index
    %c4_71 = arith.constant 4 : index
    %128 = vector.load %arg5[%c0_70, %c4_71] : memref<16x6xf32, #tpu.memory_space<vmem>>, vector<16x1xf32>
    %c0_72 = arith.constant 0 : index
    %c5_73 = arith.constant 5 : index
    %129 = vector.load %arg5[%c0_72, %c5_73] : memref<16x6xf32, #tpu.memory_space<vmem>>, vector<16x1xf32>
    %130 = arith.mulf %127, %127 : vector<16x512xf32>
    %131 = tpu.concatenate %127, %130 in 0 : vector<16x512xf32>, vector<16x512xf32> -> vector<32x512xf32>
    %cst_74 = arith.constant dense<0.000000e+00> : vector<32xf32>
    %132 = vector.multi_reduction <add>, %131, %cst_74 [1] : vector<32x512xf32> to vector<32xf32>
    %133 = vector.shape_cast %132 : vector<32xf32> to vector<32x1xf32>
    %134 = vector.extract_strided_slice %133 {offsets = [0, 0], sizes = [16, 1], strides = [1, 1]} : vector<32x1xf32> to vector<16x1xf32>
    %cst_75 = arith.constant 0.001953125 : f32
    %135 = vector.broadcast %cst_75 : f32 to vector<16x1xf32>
    %136 = arith.mulf %134, %135 : vector<16x1xf32>
    %137 = vector.extract_strided_slice %133 {offsets = [16, 0], sizes = [16, 1], strides = [1, 1]} : vector<32x1xf32> to vector<16x1xf32>
    %cst_76 = arith.constant 0.001953125 : f32
    %138 = vector.broadcast %cst_76 : f32 to vector<16x1xf32>
    %139 = arith.mulf %137, %138 : vector<16x1xf32>
    %140 = arith.mulf %136, %136 : vector<16x1xf32>
    %141 = arith.subf %139, %140 : vector<16x1xf32>
    %cst_77 = arith.constant 0.000000e+00 : f32
    %142 = vector.broadcast %cst_77 : f32 to vector<16x1xf32>
    %143 = arith.maximumf %141, %142 : vector<16x1xf32>
    %cst_78 = arith.constant 9.99999974E-6 : f32
    %144 = vector.broadcast %cst_78 : f32 to vector<16x1xf32>
    %145 = arith.addf %143, %144 : vector<16x1xf32>
    %146 = math.rsqrt %145 : vector<16x1xf32>
    %147 = arith.mulf %128, %146 : vector<16x1xf32>
    %148 = arith.mulf %136, %147 : vector<16x1xf32>
    %149 = arith.subf %129, %148 : vector<16x1xf32>
    %150 = vector.broadcast %147 : vector<16x1xf32> to vector<16x512xf32>
    %151 = arith.mulf %127, %150 : vector<16x512xf32>
    %152 = vector.broadcast %149 : vector<16x1xf32> to vector<16x512xf32>
    %153 = arith.addf %151, %152 : vector<16x512xf32>
    %c0_79 = arith.constant 0 : index
    %c0_80 = arith.constant 0 : index
    %154 = vector.load %arg1[%c0_79, %c0_80] : memref<16x512xf32, #tpu.memory_space<vmem>>, vector<16x512xf32>
    %155 = arith.addf %153, %154 : vector<16x512xf32>
    %cst_81 = arith.constant 0.000000e+00 : f32
    %156 = vector.broadcast %cst_81 : f32 to vector<16x512xf32>
    %157 = arith.maximumf %155, %156 : vector<16x512xf32>
    %c0_82 = arith.constant 0 : index
    %c0_83 = arith.constant 0 : index
    %158 = vector.load %arg7[%c0_82, %c0_83] : memref<16x512xf32, #tpu.memory_space<vmem>>, vector<16x512xf32>
    tpu.vector_store %arg7[%c0_82, %c0_83], %157 {strides = array<i32>} : memref<16x512xf32, #tpu.memory_space<vmem>>, vector<16x512xf32>,
    return
  }
  func.func @transform_0(%arg0: i32) -> (i32, i32) {
    %c0_i32 = arith.constant 0 : i32
    %c0_i32_0 = arith.constant 0 : i32
    %c0_i32_1 = arith.constant 0 : i32
    return %c0_i32, %c0_i32_0 : i32, i32
  }
  func.func @transform_1(%arg0: i32) -> (i32, i32) {
    %c0_i32 = arith.constant 0 : i32
    %c0_i32_0 = arith.constant 0 : i32
    %c0_i32_1 = arith.constant 0 : i32
    return %c0_i32, %c0_i32_0 : i32, i32
  }
  func.func @transform_2(%arg0: i32) -> (i32, i32, i32) {
    %c0_i32 = arith.constant 0 : i32
    %c0_i32_0 = arith.constant 0 : i32
    %c0_i32_1 = arith.constant 0 : i32
    %c0_i32_2 = arith.constant 0 : i32
    return %c0_i32, %c0_i32_0, %c0_i32_1 : i32, i32, i32
  }
  func.func @transform_3(%arg0: i32) -> (i32, i32) {
    %c0_i32 = arith.constant 0 : i32
    %c0_i32_0 = arith.constant 0 : i32
    %c0_i32_1 = arith.constant 0 : i32
    return %c0_i32, %c0_i32_0 : i32, i32
  }
  func.func @transform_4(%arg0: i32) -> (i32, i32) {
    %c0_i32 = arith.constant 0 : i32
    %c0_i32_0 = arith.constant 0 : i32
    %c0_i32_1 = arith.constant 0 : i32
    return %c0_i32, %c0_i32_0 : i32, i32
  }
  func.func @transform_5(%arg0: i32) -> (i32, i32) {
    %c0_i32 = arith.constant 0 : i32
    %c0_i32_0 = arith.constant 0 : i32
    %c0_i32_1 = arith.constant 0 : i32
    return %c0_i32, %c0_i32_0 : i32, i32
  }
  func.func @transform_6(%arg0: i32) -> (i32, i32) {
    %c0_i32 = arith.constant 0 : i32
    %c0_i32_0 = arith.constant 0 : i32
    %c0_i32_1 = arith.constant 0 : i32
    return %c0_i32, %c0_i32_0 : i32, i32
  }
}

</mosaic_0001>

<llo_original>
// kernel: tpu_custom_call.1
$region0: #{tpu_custom_call.1}
  #allocation0 [shape = 'u32[]', space=smem, size = 0x4, offset = 0x4, fixed_abs, tag = 'smem constant byte address 0x4 - core index']
  #allocation1 [shape = 'u32[144,128]{1,0:T(1,128)}', space=vmem, size = 0x12000, scoped, tag = 'internal scratch']
  %s0 = inlined_call_operand.vmem [shape: f32[16,512], index: 0, kind: input, shape index: {}]
  %s1 = inlined_call_operand.vmem [shape: f32[4,16], index: 1, kind: input, shape index: {}]
  %s2 = inlined_call_operand.vmem [shape: f32[9,4,4], index: 2, kind: input, shape index: {}]
  %s3 = inlined_call_operand.vmem [shape: f32[16,4], index: 3, kind: input, shape index: {}]
  %s4 = inlined_call_operand.vmem [shape: f32[16,6], index: 4, kind: input, shape index: {}]
  %s5 = inlined_call_operand.hbm [shape: f32[9,512], index: 5, kind: input, shape index: {}]
  %s6 = inlined_call_operand.hbm [shape: f32[16,512], index: 6, kind: output, shape index: {}]
  %s7 = sld [smem:[#allocation0]]
  $region38: #{tpu_custom_call.1} parent=0
    _
  %s9 = ssub.s32 1, %s7
  %s10 = scalar_select 0, %s9, %s7
  $region1: #{tpu_custom_call.1} parent=0
    #allocation2 [shape = 'u8[32768]{0}', space=vmem, size = 0x8000, scoped, tag = 'input window, operand 5, single buffered']
    #allocation3 [shape = 's32[1]{0}', space=sflag, size = 0x4, scoped, tag = 'scoped memory for tpu_custom_call.1']
    #allocation4 [shape = 's32[1]{0}', space=sflag, size = 0x4, scoped, tag = 'scoped memory for tpu_custom_call.1']
    #allocation5 [shape = 'u8[32768]{0}', space=vmem, size = 0x8000, scoped, tag = 'output window, operand 0, single buffered']
    %11 = vsyncpa [#allocation3], 0
    %12 = vsyncpa [#allocation4], 0
    // Predicated region
    $region2: #{tpu_custom_call.1} parent=1 // pred_check
      _
    $region3: #{tpu_custom_call.1} parent=1 // pred_check_branch
      %14 = sbr.rel (0) target = $region5
    $region4: #{tpu_custom_call.1} parent=1 // pred_region
      _
    $region5: #{tpu_custom_call.1} parent=1 // pred_fallthru
      _
    // Predicated region
    $region6: #{tpu_custom_call.1} parent=1 // pred_check
      _
    $region7: #{tpu_custom_call.1} parent=1 // pred_check_branch
      %16 = sbr.rel (0) target = $region9
    $region8: #{tpu_custom_call.1} parent=1 // pred_region
      _
    $region9: #{tpu_custom_call.1} parent=1 // pred_fallthru
      _
    // Predicated region
    $region10: #{tpu_custom_call.1} parent=1 // pred_check
      _
    $region11: #{tpu_custom_call.1} parent=1 // pred_check_branch
      %18 = sbr.rel (0) target = $region13
    $region12: #{tpu_custom_call.1} parent=1 // pred_region
      _
    $region13: #{tpu_custom_call.1} parent=1 // pred_fallthru
      _
    // Predicated region
    $region14: #{tpu_custom_call.1} parent=1 // pred_check
      _
    $region15: #{tpu_custom_call.1} parent=1 // pred_check_branch
      %20 = sbr.rel (0) target = $region17
    $region16: #{tpu_custom_call.1} parent=1 // pred_region
      _
    $region17: #{tpu_custom_call.1} parent=1 // pred_fallthru
      _
    // Predicated region
    $region18: #{tpu_custom_call.1} parent=1 // pred_check
      _
    $region19: #{tpu_custom_call.1} parent=1 // pred_check_branch
      %22 = sbr.rel (0) target = $region21
    $region20: #{tpu_custom_call.1} parent=1 // pred_region
      _
    $region21: #{tpu_custom_call.1} parent=1 // pred_fallthru
      _
    // Predicated region
    $region22: #{tpu_custom_call.1} parent=1 // pred_check
      _
    $region23: #{tpu_custom_call.1} parent=1 // pred_check_branch
      %24 = sbr.rel (0) target = $region25
    $region24: #{tpu_custom_call.1} parent=1 // pred_region
      %s26 = ssub.s32 1024, 1024
      %27 = vsyncadd [#allocation3], %s26
      %s28 = sshll.u32 [#allocation2], 4
      %s29 = int_to_ptr.vmem [resolvable:$true] %s28
      %34 = dma.hbm_to_vmem [thread:$0]  %s5, 1024, %s29, [#allocation3], 512, 512, 32
    $region25: #{tpu_custom_call.1} parent=1 // pred_fallthru
      _
    // Predicated region
    $region26: #{tpu_custom_call.1} parent=1 // pred_check
      _
    $region27: #{tpu_custom_call.1} parent=1 // pred_check_branch
      %36 = sbr.rel (0) target = $region29
    $region28: #{tpu_custom_call.1} parent=1 // pred_region
      %37 = dma.done [#allocation3], 1024
    $region29: #{tpu_custom_call.1} parent=1 // pred_fallthru
      _
    %v38 = vld [vmem:[%s1] sm:$0xf]
    %v39 = vld [vmem:[%s0] sm:$0xff]
    %v40 = vld [vmem:[%s0 + $0x8] sm:$0xff]
    %v41 = vld [vmem:[%s0 + $0x10] sm:$0xff]
    %v42 = vld [vmem:[%s0 + $0x18] sm:$0xff]
    %v43 = vld [vmem:[%s0 + $0x20] sm:$0xff]
    %v44 = vld [vmem:[%s0 + $0x28] sm:$0xff]
    %v45 = vld [vmem:[%s0 + $0x30] sm:$0xff]
    %v46 = vld [vmem:[%s0 + $0x38] sm:$0xff]
    %vm47 = vcmask 130048
    %v49 = vsel %vm47, %v38, 0
    %51 = vmatprep.subr.mxu0 %v40
    %52 = vmatpush1.msra.mxu0 %v39
    %53 = vmatprep.subr.mxu0 %v44
    %54 = vmatpush1.msra.mxu0 %v43
    %55 = vmatprep.subr.mxu0 0.0
    %56 = vmatpush1.msra.mxu0 0.0
    %57 = vmatprep.subr.mxu0 0.0
    %58 = vmatpush1.msra.mxu0 0.0
    %59 = vmatprep.subr.mxu0 0.0
    %60 = vmatpush1.msra.mxu0 0.0
    %61 = vmatprep.subr.mxu0 0.0
    %62 = vmatpush1.msra.mxu0 0.0
    %63 = vmatprep.subr.mxu0 0.0
    %64 = vmatpush1.msra.mxu0 0.0
    %65 = vmatprep.subr.mxu0 0.0
    %66 = vmatpush1.msra.mxu0 0.0
    %67 = vmatprep.subr.mxu0 0.0
    %68 = vmatpush1.msra.mxu0 0.0
    %69 = vmatprep.subr.mxu0 0.0
    %70 = vmatpush1.msra.mxu0 0.0
    %71 = vmatprep.subr.mxu0 0.0
    %72 = vmatpush1.msra.mxu0 0.0
    %73 = vmatprep.subr.mxu0 0.0
    %74 = vmatpush1.msra.mxu0 0.0
    %75 = vmatprep.subr.mxu0 0.0
    %76 = vmatpush1.msra.mxu0 0.0
    %77 = vmatprep.subr.mxu0 0.0
    %78 = vmatpush1.msra.mxu0 0.0
    %79 = vmatprep.subr.mxu0 0.0
    %80 = vmatpush1.msra.mxu0 0.0
    %81 = vmatprep.subr.mxu0 0.0
    %82 = vmatpush1.msra.mxu0 0.0
    %83 = vmatprep.subr.mxu0 0.0
    %84 = vmatpush1.msra.mxu0 0.0
    %85 = vmatprep.subr.mxu0 0.0
    %86 = vmatpush1.msra.mxu0 0.0
    %87 = vmatprep.subr.mxu0 0.0
    %88 = vmatpush1.msra.mxu0 0.0
    %89 = vmatprep.subr.mxu0 0.0
    %90 = vmatpush1.msra.mxu0 0.0
    %91 = vmatprep.subr.mxu0 0.0
    %92 = vmatpush1.msra.mxu0 0.0
    %93 = vmatprep.subr.mxu0 0.0
    %94 = vmatpush1.msra.mxu0 0.0
    %95 = vmatprep.subr.mxu0 0.0
    %96 = vmatpush1.msra.mxu0 0.0
    %97 = vmatprep.subr.mxu0 0.0
    %98 = vmatpush1.msra.mxu0 0.0
    %99 = vmatprep.subr.mxu0 0.0
    %100 = vmatpush1.msra.mxu0 0.0
    %101 = vmatprep.subr.mxu0 0.0
    %102 = vmatpush1.msra.mxu0 0.0
    %103 = vmatprep.subr.mxu0 0.0
    %104 = vmatpush1.msra.mxu0 0.0
    %105 = vmatprep.subr.mxu0 0.0
    %106 = vmatpush1.msra.mxu0 0.0
    %107 = vmatprep.subr.mxu0 0.0
    %108 = vmatpush1.msra.mxu0 0.0
    %109 = vmatprep.subr.mxu0 0.0
    %110 = vmatpush1.msra.mxu0 0.0
    %111 = vmatprep.subr.mxu0 0.0
    %112 = vmatpush1.msra.mxu0 0.0
    %113 = vmatprep.subr.mxu0 0.0
    %114 = vmatpush1.msra.mxu0 0.0
    %115 = vmatprep.mubr.f32.mxu0 0.0
    %116 = vmatmul.mubr.f32.gmra.mrb[0].mxu0 %v49
    %v117 = vpop.f32.mrb[0].mxu0
    %v118 = vadd.f32 0.0, %v117
    %v119 = vpop.f32.mrb[0].mxu0
    %v120 = vadd.f32 0.0, %v119
    %121 = vdwg.mxu0
    %122 = vmatprep.subr.mxu0 %v42
    %123 = vmatpush1.msra.mxu0 %v41
    %124 = vmatprep.subr.mxu0 %v46
    %125 = vmatpush1.msra.mxu0 %v45
    %126 = vmatprep.subr.mxu0 0.0
    %127 = vmatpush1.msra.mxu0 0.0
    %128 = vmatprep.subr.mxu0 0.0
    %129 = vmatpush1.msra.mxu0 0.0
    %130 = vmatprep.subr.mxu0 0.0
    %131 = vmatpush1.msra.mxu0 0.0
    %132 = vmatprep.subr.mxu0 0.0
    %133 = vmatpush1.msra.mxu0 0.0
    %134 = vmatprep.subr.mxu0 0.0
    %135 = vmatpush1.msra.mxu0 0.0
    %136 = vmatprep.subr.mxu0 0.0
    %137 = vmatpush1.msra.mxu0 0.0
    %138 = vmatprep.subr.mxu0 0.0
    %139 = vmatpush1.msra.mxu0 0.0
    %140 = vmatprep.subr.mxu0 0.0
    %141 = vmatpush1.msra.mxu0 0.0
    %142 = vmatprep.subr.mxu0 0.0
    %143 = vmatpush1.msra.mxu0 0.0
    %144 = vmatprep.subr.mxu0 0.0
    %145 = vmatpush1.msra.mxu0 0.0
    %146 = vmatprep.subr.mxu0 0.0
    %147 = vmatpush1.msra.mxu0 0.0
    %148 = vmatprep.subr.mxu0 0.0
    %149 = vmatpush1.msra.mxu0 0.0
    %150 = vmatprep.subr.mxu0 0.0
    %151 = vmatpush1.msra.mxu0 0.0
    %152 = vmatprep.subr.mxu0 0.0
    %153 = vmatpush1.msra.mxu0 0.0
    %154 = vmatprep.subr.mxu0 0.0
    %155 = vmatpush1.msra.mxu0 0.0
    %156 = vmatprep.subr.mxu0 0.0
    %157 = vmatpush1.msra.mxu0 0.0
    %158 = vmatprep.subr.mxu0 0.0
    %159 = vmatpush1.msra.mxu0 0.0
    %160 = vmatprep.subr.mxu0 0.0
    %161 = vmatpush1.msra.mxu0 0.0
    %162 = vmatprep.subr.mxu0 0.0
    %163 = vmatpush1.msra.mxu0 0.0
    %164 = vmatprep.subr.mxu0 0.0
    %165 = vmatpush1.msra.mxu0 0.0
    %166 = vmatprep.subr.mxu0 0.0
    %167 = vmatpush1.msra.mxu0 0.0
    %168 = vmatprep.subr.mxu0 0.0
    %169 = vmatpush1.msra.mxu0 0.0
    %170 = vmatprep.subr.mxu0 0.0
    %171 = vmatpush1.msra.mxu0 0.0
    %172 = vmatprep.subr.mxu0 0.0
    %173 = vmatpush1.msra.mxu0 0.0
    %174 = vmatprep.subr.mxu0 0.0
    %175 = vmatpush1.msra.mxu0 0.0
    %176 = vmatprep.subr.mxu0 0.0
    %177 = vmatpush1.msra.mxu0 0.0
    %178 = vmatprep.subr.mxu0 0.0
    %179 = vmatpush1.msra.mxu0 0.0
    %180 = vmatprep.subr.mxu0 0.0
    %181 = vmatpush1.msra.mxu0 0.0
    %182 = vmatprep.subr.mxu0 0.0
    %183 = vmatpush1.msra.mxu0 0.0
    %184 = vmatprep.subr.mxu0 0.0
    %185 = vmatpush1.msra.mxu0 0.0
    %186 = vmatprep.mubr.f32.mxu0 0.0
    %187 = vmatmul.mubr.f32.gmra.mrb[0].mxu0 %v49
    %v188 = vpop.f32.mrb[0].mxu0
    %v189 = vadd.f32 0.0, %v188
    %v190 = vpop.f32.mrb[0].mxu0
    %v191 = vadd.f32 0.0, %v190
    %192 = vdwg.mxu0
    %v193 = vld [vmem:[%s4] sm:$0xf]
    %v194 = vmul.f32 %v118, %v118
    %v195 = vmul.f32 %v120, %v120
    %v196 = vmul.f32 %v189, %v189
    %v197 = vmul.f32 %v191, %v191
    %v202 = vrot.slane %v194, 4
    %v203 = vrot.slane %v195, 4
    %v204 = vrot.slane %v196, 4
    %v205 = vrot.slane %v197, 4
    %vm210 = vcmask 1043456
    %v211 = vsel %vm210, %v118, %v202
    %v212 = vsel %vm210, %v120, %v203
    %v213 = vsel %vm210, %v189, %v204
    %v214 = vsel %vm210, %v191, %v205
    %v215 = vadd.f32 %v211, %v212
    %v216 = vadd.f32 %v215, %v213
    %v217 = vadd.f32 %v216, %v214
    %218 = vadd.xlane.f32.xlu0 %v217
    %v219 = vpop.xlane.xlu0 %218
    %v220 = vmul.f32 %v219, 0.001953125
    %v221 = vmul.f32 %v220, %v220
    %v223 = vrot.slane %v221, 4
    %v225 = vsub.f32 %v220, %v223
    %v226 = vmax.f32 %v225, 0.0
    %v227 = vadd.f32 %v226, 1e-05
    %v228 = vrsqrt.pop %v227
    %v230 = vrot.slane %v228, 4
    %v232 = vmul.f32 %v193, %v230
    %v233 = vmul.f32 %v220, %v232
    %235 = vrot.lane.b32.xlu0 %v233, 1
    %v236 = vpop.permute.xlu0 %235
    %v238 = vsub.f32 %v193, %v236
    %240 = vset.pattern.permute.xlu0 0
    %241 = vperm.xlu0 %240, %v232
    %v242 = vpop.permute.xlu0 %241
    %v244 = vmul.f32 %v118, %v242
    %v245 = vmul.f32 %v120, %v242
    %v246 = vmul.f32 %v189, %v242
    %v247 = vmul.f32 %v191, %v242
    %249 = vset.pattern.permute.xlu0 1
    %250 = vperm.xlu0 %249, %v238
    %v251 = vpop.permute.xlu0 %250
    %v253 = vadd.f32 %v244, %v251
    %v254 = vadd.f32 %v245, %v251
    %v255 = vadd.f32 %v246, %v251
    %v256 = vadd.f32 %v247, %v251
    %v257 = vmax.f32 %v253, 0.0
    %v258 = vmax.f32 %v254, 0.0
    %v259 = vmax.f32 %v255, 0.0
    %v260 = vmax.f32 %v256, 0.0
    %261 = vrot.lane.b32.xlu0 %v257, 17
    %v262 = vpop.permute.xlu0 %261
    %263 = vrot.lane.b32.xlu0 %v258, 17
    %v264 = vpop.permute.xlu0 %263
    %265 = vrot.lane.b32.xlu0 %v259, 17
    %v266 = vpop.permute.xlu0 %265
    %267 = vrot.lane.b32.xlu0 %v260, 17
    %v268 = vpop.permute.xlu0 %267
    %v269 = vlaneseq
    %v270 = vand.u32 %v269, 127
    %vm271 = vcmp.lt.s32.totalorder %v270, 17
    %v272 = vsel %vm271, %v266, %v268
    %v273 = vsel %vm271, %v264, %v266
    %v274 = vsel %vm271, %v262, %v264
    %v275 = vsel %vm271, %v268, %v262
    %v276 = vld [vmem:[#allocation2] ss:$8 sm:$0xf]
    %v278 = vlaneseq
    %v279 = vshrl.u32 %v278, 7
    %v280 = vsub.s32 0, %v279
    %v281 = vrot.slane %v276, %v280
    %v282 = vlaneseq
    %v283 = vshrl.u32 %v282, 7
    %v284 = vsub.s32 1, %v283
    %v285 = vrot.slane %v276, %v284
    %v286 = vlaneseq
    %v287 = vshrl.u32 %v286, 7
    %v288 = vsub.s32 2, %v287
    %v289 = vrot.slane %v276, %v288
    %v290 = vlaneseq
    %v291 = vshrl.u32 %v290, 7
    %v292 = vsub.s32 3, %v291
    %v293 = vrot.slane %v276, %v292
    %v298 = vmul.f32 %v275, %v281
    %v299 = vmul.f32 %v274, %v285
    %v300 = vmul.f32 %v273, %v289
    %v301 = vmul.f32 %v272, %v293
    %v302 = vld [vmem:[%s2] sm:$0xf]
    %303 = vrot.lane.b32.xlu0 %v257, 16
    %v304 = vpop.permute.xlu0 %303
    %305 = vrot.lane.b32.xlu0 %v258, 16
    %v306 = vpop.permute.xlu0 %305
    %307 = vrot.lane.b32.xlu0 %v259, 16
    %v308 = vpop.permute.xlu0 %307
    %309 = vrot.lane.b32.xlu0 %v260, 16
    %v310 = vpop.permute.xlu0 %309
    %vm311 = vcmp.lt.s32.totalorder %v270, 16
    %v312 = vsel %vm311, %v308, %v310
    %v313 = vsel %vm311, %v306, %v308
    %v314 = vsel %vm311, %v304, %v306
    %v315 = vsel %vm311, %v310, %v304
    %s316 = scalar_lea.vmem [#allocation2], 1
    %v317 = vld [vmem:[%s316] ss:$8 sm:$0xf]
    %v319 = vlaneseq
    %v320 = vshrl.u32 %v319, 7
    %v321 = vsub.s32 0, %v320
    %v322 = vrot.slane %v317, %v321
    %v323 = vlaneseq
    %v324 = vshrl.u32 %v323, 7
    %v325 = vsub.s32 1, %v324
    %v326 = vrot.slane %v317, %v325
    %v327 = vlaneseq
    %v328 = vshrl.u32 %v327, 7
    %v329 = vsub.s32 2, %v328
    %v330 = vrot.slane %v317, %v329
    %v331 = vlaneseq
    %v332 = vshrl.u32 %v331, 7
    %v333 = vsub.s32 3, %v332
    %v334 = vrot.slane %v317, %v333
    %v339 = vmul.f32 %v315, %v322
    %v340 = vmul.f32 %v314, %v326
    %v341 = vmul.f32 %v313, %v330
    %v342 = vmul.f32 %v312, %v334
    %s343 = scalar_lea.vmem %s2, 4
    %v344 = vld [vmem:[%s343] sm:$0xf]
    %vm345 = vcmask 31744
    %v347 = vsel %vm345, %v344, 0
    %v350 = vsel %vm210, %v339, 0
    %v353 = vsel %vm210, %v340, 0
    %v356 = vsel %vm210, %v341, 0
    %v359 = vsel %vm210, %v342, 0
    %361 = vmatprep.subr.mxu0 %v353
    %362 = vmatpush1.msra.mxu0 %v350
    %363 = vmatprep.subr.mxu0 0.0
    %364 = vmatpush1.msra.mxu0 0.0
    %365 = vmatprep.subr.mxu0 0.0
    %366 = vmatpush1.msra.mxu0 0.0
    %367 = vmatprep.subr.mxu0 0.0
    %368 = vmatpush1.msra.mxu0 0.0
    %369 = vmatprep.subr.mxu0 0.0
    %370 = vmatpush1.msra.mxu0 0.0
    %371 = vmatprep.subr.mxu0 0.0
    %372 = vmatpush1.msra.mxu0 0.0
    %373 = vmatprep.subr.mxu0 0.0
    %374 = vmatpush1.msra.mxu0 0.0
    %375 = vmatprep.subr.mxu0 0.0
    %376 = vmatpush1.msra.mxu0 0.0
    %377 = vmatprep.subr.mxu0 0.0
    %378 = vmatpush1.msra.mxu0 0.0
    %379 = vmatprep.subr.mxu0 0.0
    %380 = vmatpush1.msra.mxu0 0.0
    %381 = vmatprep.subr.mxu0 0.0
    %382 = vmatpush1.msra.mxu0 0.0
    %383 = vmatprep.subr.mxu0 0.0
    %384 = vmatpush1.msra.mxu0 0.0
    %385 = vmatprep.subr.mxu0 0.0
    %386 = vmatpush1.msra.mxu0 0.0
    %387 = vmatprep.subr.mxu0 0.0
    %388 = vmatpush1.msra.mxu0 0.0
    %389 = vmatprep.subr.mxu0 0.0
    %390 = vmatpush1.msra.mxu0 0.0
    %391 = vmatprep.subr.mxu0 0.0
    %392 = vmatpush1.msra.mxu0 0.0
    %393 = vmatprep.subr.mxu0 0.0
    %394 = vmatpush1.msra.mxu0 0.0
    %395 = vmatprep.subr.mxu0 0.0
    %396 = vmatpush1.msra.mxu0 0.0
    %397 = vmatprep.subr.mxu0 0.0
    %398 = vmatpush1.msra.mxu0 0.0
    %399 = vmatprep.subr.mxu0 0.0
    %400 = vmatpush1.msra.mxu0 0.0
    %401 = vmatprep.subr.mxu0 0.0
    %402 = vmatpush1.msra.mxu0 0.0
    %403 = vmatprep.subr.mxu0 0.0
    %404 = vmatpush1.msra.mxu0 0.0
    %405 = vmatprep.subr.mxu0 0.0
    %406 = vmatpush1.msra.mxu0 0.0
    %407 = vmatprep.subr.mxu0 0.0
    %408 = vmatpush1.msra.mxu0 0.0
    %409 = vmatprep.subr.mxu0 0.0
    %410 = vmatpush1.msra.mxu0 0.0
    %411 = vmatprep.subr.mxu0 0.0
    %412 = vmatpush1.msra.mxu0 0.0
    %413 = vmatprep.subr.mxu0 0.0
    %414 = vmatpush1.msra.mxu0 0.0
    %415 = vmatprep.subr.mxu0 0.0
    %416 = vmatpush1.msra.mxu0 0.0
    %417 = vmatprep.subr.mxu0 0.0
    %418 = vmatpush1.msra.mxu0 0.0
    %419 = vmatprep.subr.mxu0 0.0
    %420 = vmatpush1.msra.mxu0 0.0
    %421 = vmatprep.subr.mxu0 0.0
    %422 = vmatpush1.msra.mxu0 0.0
    %423 = vmatprep.subr.mxu0 0.0
    %424 = vmatpush1.msra.mxu0 0.0
    %425 = vmatprep.mubr.f32.mxu0 0.0
    %426 = vmatmul.mubr.f32.gmra.mrb[0].mxu0 %v347
    %v427 = vpop.f32.mrb[0].mxu0
    %v428 = vadd.f32 0.0, %v427
    %v429 = vpop.f32.mrb[0].mxu0
    %v430 = vadd.f32 0.0, %v429
    %431 = vdwg.mxu0
    %432 = vmatprep.subr.mxu0 %v359
    %433 = vmatpush1.msra.mxu0 %v356
    %434 = vmatprep.subr.mxu0 0.0
    %435 = vmatpush1.msra.mxu0 0.0
    %436 = vmatprep.subr.mxu0 0.0
    %437 = vmatpush1.msra.mxu0 0.0
    %438 = vmatprep.subr.mxu0 0.0
    %439 = vmatpush1.msra.mxu0 0.0
    %440 = vmatprep.subr.mxu0 0.0
    %441 = vmatpush1.msra.mxu0 0.0
    %442 = vmatprep.subr.mxu0 0.0
    %443 = vmatpush1.msra.mxu0 0.0
    %444 = vmatprep.subr.mxu0 0.0
    %445 = vmatpush1.msra.mxu0 0.0
    %446 = vmatprep.subr.mxu0 0.0
    %447 = vmatpush1.msra.mxu0 0.0
    %448 = vmatprep.subr.mxu0 0.0
    %449 = vmatpush1.msra.mxu0 0.0
    %450 = vmatprep.subr.mxu0 0.0
    %451 = vmatpush1.msra.mxu0 0.0
    %452 = vmatprep.subr.mxu0 0.0
    %453 = vmatpush1.msra.mxu0 0.0
    %454 = vmatprep.subr.mxu0 0.0
    %455 = vmatpush1.msra.mxu0 0.0
    %456 = vmatprep.subr.mxu0 0.0
    %457 = vmatpush1.msra.mxu0 0.0
    %458 = vmatprep.subr.mxu0 0.0
    %459 = vmatpush1.msra.mxu0 0.0
    %460 = vmatprep.subr.mxu0 0.0
    %461 = vmatpush1.msra.mxu0 0.0
    %462 = vmatprep.subr.mxu0 0.0
    %463 = vmatpush1.msra.mxu0 0.0
    %464 = vmatprep.subr.mxu0 0.0
    %465 = vmatpush1.msra.mxu0 0.0
    %466 = vmatprep.subr.mxu0 0.0
    %467 = vmatpush1.msra.mxu0 0.0
    %468 = vmatprep.subr.mxu0 0.0
    %469 = vmatpush1.msra.mxu0 0.0
    %470 = vmatprep.subr.mxu0 0.0
    %471 = vmatpush1.msra.mxu0 0.0
    %472 = vmatprep.subr.mxu0 0.0
    %473 = vmatpush1.msra.mxu0 0.0
    %474 = vmatprep.subr.mxu0 0.0
    %475 = vmatpush1.msra.mxu0 0.0
    %476 = vmatprep.subr.mxu0 0.0
    %477 = vmatpush1.msra.mxu0 0.0
    %478 = vmatprep.subr.mxu0 0.0
    %479 = vmatpush1.msra.mxu0 0.0
    %480 = vmatprep.subr.mxu0 0.0
    %481 = vmatpush1.msra.mxu0 0.0
    %482 = vmatprep.subr.mxu0 0.0
    %483 = vmatpush1.msra.mxu0 0.0
    %484 = vmatprep.subr.mxu0 0.0
    %485 = vmatpush1.msra.mxu0 0.0
    %486 = vmatprep.subr.mxu0 0.0
    %487 = vmatpush1.msra.mxu0 0.0
    %488 = vmatprep.subr.mxu0 0.0
    %489 = vmatpush1.msra.mxu0 0.0
    %490 = vmatprep.subr.mxu0 0.0
    %491 = vmatpush1.msra.mxu0 0.0
    %492 = vmatprep.subr.mxu0 0.0
    %493 = vmatpush1.msra.mxu0 0.0
    %494 = vmatprep.subr.mxu0 0.0
    %495 = vmatpush1.msra.mxu0 0.0
    %496 = vmatprep.mubr.f32.mxu0 0.0
    %497 = vmatmul.mubr.f32.gmra.mrb[0].mxu0 %v347
    %v498 = vpop.f32.mrb[0].mxu0
    %v499 = vadd.f32 0.0, %v498
    %v500 = vpop.f32.mrb[0].mxu0
    %v501 = vadd.f32 0.0, %v500
    %502 = vdwg.mxu0
    %v504 = vsel %vm345, %v302, 0
    %v507 = vsel %vm210, %v298, 0
    %v510 = vsel %vm210, %v299, 0
    %v513 = vsel %vm210, %v300, 0
    %v516 = vsel %vm210, %v301, 0
    %518 = vmatprep.subr.mxu0 %v510
    %519 = vmatpush1.msra.mxu0 %v507
    %520 = vmatprep.subr.mxu0 0.0
    %521 = vmatpush1.msra.mxu0 0.0
    %522 = vmatprep.subr.mxu0 0.0
    %523 = vmatpush1.msra.mxu0 0.0
    %524 = vmatprep.subr.mxu0 0.0
    %525 = vmatpush1.msra.mxu0 0.0
    %526 = vmatprep.subr.mxu0 0.0
    %527 = vmatpush1.msra.mxu0 0.0
    %528 = vmatprep.subr.mxu0 0.0
    %529 = vmatpush1.msra.mxu0 0.0
    %530 = vmatprep.subr.mxu0 0.0
    %531 = vmatpush1.msra.mxu0 0.0
    %532 = vmatprep.subr.mxu0 0.0
    %533 = vmatpush1.msra.mxu0 0.0
    %534 = vmatprep.subr.mxu0 0.0
    %535 = vmatpush1.msra.mxu0 0.0
    %536 = vmatprep.subr.mxu0 0.0
    %537 = vmatpush1.msra.mxu0 0.0
    %538 = vmatprep.subr.mxu0 0.0
    %539 = vmatpush1.msra.mxu0 0.0
    %540 = vmatprep.subr.mxu0 0.0
    %541 = vmatpush1.msra.mxu0 0.0
    %542 = vmatprep.subr.mxu0 0.0
    %543 = vmatpush1.msra.mxu0 0.0
    %544 = vmatprep.subr.mxu0 0.0
    %545 = vmatpush1.msra.mxu0 0.0
    %546 = vmatprep.subr.mxu0 0.0
    %547 = vmatpush1.msra.mxu0 0.0
    %548 = vmatprep.subr.mxu0 0.0
    %549 = vmatpush1.msra.mxu0 0.0
    %550 = vmatprep.subr.mxu0 0.0
    %551 = vmatpush1.msra.mxu0 0.0
    %552 = vmatprep.subr.mxu0 0.0
    %553 = vmatpush1.msra.mxu0 0.0
    %554 = vmatprep.subr.mxu0 0.0
    %555 = vmatpush1.msra.mxu0 0.0
    %556 = vmatprep.subr.mxu0 0.0
    %557 = vmatpush1.msra.mxu0 0.0
    %558 = vmatprep.subr.mxu0 0.0
    %559 = vmatpush1.msra.mxu0 0.0
    %560 = vmatprep.subr.mxu0 0.0
    %561 = vmatpush1.msra.mxu0 0.0
    %562 = vmatprep.subr.mxu0 0.0
    %563 = vmatpush1.msra.mxu0 0.0
    %564 = vmatprep.subr.mxu0 0.0
    %565 = vmatpush1.msra.mxu0 0.0
    %566 = vmatprep.subr.mxu0 0.0
    %567 = vmatpush1.msra.mxu0 0.0
    %568 = vmatprep.subr.mxu0 0.0
    %569 = vmatpush1.msra.mxu0 0.0
    %570 = vmatprep.subr.mxu0 0.0
    %571 = vmatpush1.msra.mxu0 0.0
    %572 = vmatprep.subr.mxu0 0.0
    %573 = vmatpush1.msra.mxu0 0.0
    %574 = vmatprep.subr.mxu0 0.0
    %575 = vmatpush1.msra.mxu0 0.0
    %576 = vmatprep.subr.mxu0 0.0
    %577 = vmatpush1.msra.mxu0 0.0
    %578 = vmatprep.subr.mxu0 0.0
    %579 = vmatpush1.msra.mxu0 0.0
    %580 = vmatprep.subr.mxu0 0.0
    %581 = vmatpush1.msra.mxu0 0.0
    %582 = vmatprep.mubr.f32.mxu0 0.0
    %583 = vmatmul.mubr.f32.gmra.mrb[0].mxu0 %v504
    %v584 = vpop.f32.mrb[0].mxu0
    %v585 = vadd.f32 %v428, %v584
    %v586 = vpop.f32.mrb[0].mxu0
    %v587 = vadd.f32 %v430, %v586
    %588 = vdwg.mxu0
    %589 = vmatprep.subr.mxu0 %v516
    %590 = vmatpush1.msra.mxu0 %v513
    %591 = vmatprep.subr.mxu0 0.0
    %592 = vmatpush1.msra.mxu0 0.0
    %593 = vmatprep.subr.mxu0 0.0
    %594 = vmatpush1.msra.mxu0 0.0
    %595 = vmatprep.subr.mxu0 0.0
    %596 = vmatpush1.msra.mxu0 0.0
    %597 = vmatprep.subr.mxu0 0.0
    %598 = vmatpush1.msra.mxu0 0.0
    %599 = vmatprep.subr.mxu0 0.0
    %600 = vmatpush1.msra.mxu0 0.0
    %601 = vmatprep.subr.mxu0 0.0
    %602 = vmatpush1.msra.mxu0 0.0
    %603 = vmatprep.subr.mxu0 0.0
    %604 = vmatpush1.msra.mxu0 0.0
    %605 = vmatprep.subr.mxu0 0.0
    %606 = vmatpush1.msra.mxu0 0.0
    %607 = vmatprep.subr.mxu0 0.0
    %608 = vmatpush1.msra.mxu0 0.0
    %609 = vmatprep.subr.mxu0 0.0
    %610 = vmatpush1.msra.mxu0 0.0
    %611 = vmatprep.subr.mxu0 0.0
    %612 = vmatpush1.msra.mxu0 0.0
    %613 = vmatprep.subr.mxu0 0.0
    %614 = vmatpush1.msra.mxu0 0.0
    %615 = vmatprep.subr.mxu0 0.0
    %616 = vmatpush1.msra.mxu0 0.0
    %617 = vmatprep.subr.mxu0 0.0
    %618 = vmatpush1.msra.mxu0 0.0
    %619 = vmatprep.subr.mxu0 0.0
    %620 = vmatpush1.msra.mxu0 0.0
    %621 = vmatprep.subr.mxu0 0.0
    %622 = vmatpush1.msra.mxu0 0.0
    %623 = vmatprep.subr.mxu0 0.0
    %624 = vmatpush1.msra.mxu0 0.0
    %625 = vmatprep.subr.mxu0 0.0
    %626 = vmatpush1.msra.mxu0 0.0
    %627 = vmatprep.subr.mxu0 0.0
    %628 = vmatpush1.msra.mxu0 0.0
    %629 = vmatprep.subr.mxu0 0.0
    %630 = vmatpush1.msra.mxu0 0.0
    %631 = vmatprep.subr.mxu0 0.0
    %632 = vmatpush1.msra.mxu0 0.0
    %633 = vmatprep.subr.mxu0 0.0
    %634 = vmatpush1.msra.mxu0 0.0
    %635 = vmatprep.subr.mxu0 0.0
    %636 = vmatpush1.msra.mxu0 0.0
    %637 = vmatprep.subr.mxu0 0.0
    %638 = vmatpush1.msra.mxu0 0.0
    %639 = vmatprep.subr.mxu0 0.0
    %640 = vmatpush1.msra.mxu0 0.0
    %641 = vmatprep.subr.mxu0 0.0
    %642 = vmatpush1.msra.mxu0 0.0
    %643 = vmatprep.subr.mxu0 0.0
    %644 = vmatpush1.msra.mxu0 0.0
    %645 = vmatprep.subr.mxu0 0.0
    %646 = vmatpush1.msra.mxu0 0.0
    %647 = vmatprep.subr.mxu0 0.0
    %648 = vmatpush1.msra.mxu0 0.0
    %649 = vmatprep.subr.mxu0 0.0
    %650 = vmatpush1.msra.mxu0 0.0
    %651 = vmatprep.subr.mxu0 0.0
    %652 = vmatpush1.msra.mxu0 0.0
    %653 = vmatprep.mubr.f32.mxu0 0.0
    %654 = vmatmul.mubr.f32.gmra.mrb[0].mxu0 %v504
    %v655 = vpop.f32.mrb[0].mxu0
    %v656 = vadd.f32 %v499, %v655
    %v657 = vpop.f32.mrb[0].mxu0
    %v658 = vadd.f32 %v501, %v657
    %659 = vdwg.mxu0
    %660 = vrot.lane.b32.xlu0 %v257, 15
    %v661 = vpop.permute.xlu0 %660
    %662 = vrot.lane.b32.xlu0 %v258, 15
    %v663 = vpop.permute.xlu0 %662
    %664 = vrot.lane.b32.xlu0 %v259, 15
    %v665 = vpop.permute.xlu0 %664
    %666 = vrot.lane.b32.xlu0 %v260, 15
    %v667 = vpop.permute.xlu0 %666
    %vm668 = vcmp.lt.s32.totalorder %v270, 15
    %v669 = vsel %vm668, %v665, %v667
    %v670 = vsel %vm668, %v663, %v665
    %v671 = vsel %vm668, %v661, %v663
    %v672 = vsel %vm668, %v667, %v661
    %s673 = scalar_lea.vmem [#allocation2], 2
    %v674 = vld [vmem:[%s673] ss:$8 sm:$0xf]
    %v676 = vlaneseq
    %v677 = vshrl.u32 %v676, 7
    %v678 = vsub.s32 0, %v677
    %v679 = vrot.slane %v674, %v678
    %v680 = vlaneseq
    %v681 = vshrl.u32 %v680, 7
    %v682 = vsub.s32 1, %v681
    %v683 = vrot.slane %v674, %v682
    %v684 = vlaneseq
    %v685 = vshrl.u32 %v684, 7
    %v686 = vsub.s32 2, %v685
    %v687 = vrot.slane %v674, %v686
    %v688 = vlaneseq
    %v689 = vshrl.u32 %v688, 7
    %v690 = vsub.s32 3, %v689
    %v691 = vrot.slane %v674, %v690
    %v696 = vmul.f32 %v672, %v679
    %v697 = vmul.f32 %v671, %v683
    %v698 = vmul.f32 %v670, %v687
    %v699 = vmul.f32 %v669, %v691
    %s700 = scalar_lea.vmem %s2, 8
    %v701 = vld [vmem:[%s700] sm:$0xf]
    %v703 = vsel %vm345, %v701, 0
    %v706 = vsel %vm210, %v696, 0
    %v709 = vsel %vm210, %v697, 0
    %v712 = vsel %vm210, %v698, 0
    %v715 = vsel %vm210, %v699, 0
    %717 = vmatprep.subr.mxu0 %v709
    %718 = vmatpush1.msra.mxu0 %v706
    %719 = vmatprep.subr.mxu0 0.0
    %720 = vmatpush1.msra.mxu0 0.0
    %721 = vmatprep.subr.mxu0 0.0
    %722 = vmatpush1.msra.mxu0 0.0
    %723 = vmatprep.subr.mxu0 0.0
    %724 = vmatpush1.msra.mxu0 0.0
    %725 = vmatprep.subr.mxu0 0.0
    %726 = vmatpush1.msra.mxu0 0.0
    %727 = vmatprep.subr.mxu0 0.0
    %728 = vmatpush1.msra.mxu0 0.0
    %729 = vmatprep.subr.mxu0 0.0
    %730 = vmatpush1.msra.mxu0 0.0
    %731 = vmatprep.subr.mxu0 0.0
    %732 = vmatpush1.msra.mxu0 0.0
    %733 = vmatprep.subr.mxu0 0.0
    %734 = vmatpush1.msra.mxu0 0.0
    %735 = vmatprep.subr.mxu0 0.0
    %736 = vmatpush1.msra.mxu0 0.0
    %737 = vmatprep.subr.mxu0 0.0
    %738 = vmatpush1.msra.mxu0 0.0
    %739 = vmatprep.subr.mxu0 0.0
    %740 = vmatpush1.msra.mxu0 0.0
    %741 = vmatprep.subr.mxu0 0.0
    %742 = vmatpush1.msra.mxu0 0.0
    %743 = vmatprep.subr.mxu0 0.0
    %744 = vmatpush1.msra.mxu0 0.0
    %745 = vmatprep.subr.mxu0 0.0
    %746 = vmatpush1.msra.mxu0 0.0
    %747 = vmatprep.subr.mxu0 0.0
    %748 = vmatpush1.msra.mxu0 0.0
    %749 = vmatprep.subr.mxu0 0.0
    %750 = vmatpush1.msra.mxu0 0.0
    %751 = vmatprep.subr.mxu0 0.0
    %752 = vmatpush1.msra.mxu0 0.0
    %753 = vmatprep.subr.mxu0 0.0
    %754 = vmatpush1.msra.mxu0 0.0
    %755 = vmatprep.subr.mxu0 0.0
    %756 = vmatpush1.msra.mxu0 0.0
    %757 = vmatprep.subr.mxu0 0.0
    %758 = vmatpush1.msra.mxu0 0.0
    %759 = vmatprep.subr.mxu0 0.0
    %760 = vmatpush1.msra.mxu0 0.0
    %761 = vmatprep.subr.mxu0 0.0
    %762 = vmatpush1.msra.mxu0 0.0
    %763 = vmatprep.subr.mxu0 0.0
    %764 = vmatpush1.msra.mxu0 0.0
    %765 = vmatprep.subr.mxu0 0.0
    %766 = vmatpush1.msra.mxu0 0.0
    %767 = vmatprep.subr.mxu0 0.0
    %768 = vmatpush1.msra.mxu0 0.0
    %769 = vmatprep.subr.mxu0 0.0
    %770 = vmatpush1.msra.mxu0 0.0
    %771 = vmatprep.subr.mxu0 0.0
    %772 = vmatpush1.msra.mxu0 0.0
    %773 = vmatprep.subr.mxu0 0.0
    %774 = vmatpush1.msra.mxu0 0.0
    %775 = vmatprep.subr.mxu0 0.0
    %776 = vmatpush1.msra.mxu0 0.0
    %777 = vmatprep.subr.mxu0 0.0
    %778 = vmatpush1.msra.mxu0 0.0
    %779 = vmatprep.subr.mxu0 0.0
    %780 = vmatpush1.msra.mxu0 0.0
    %781 = vmatprep.mubr.f32.mxu0 0.0
    %782 = vmatmul.mubr.f32.gmra.mrb[0].mxu0 %v703
    %v783 = vpop.f32.mrb[0].mxu0
    %v784 = vadd.f32 0.0, %v783
    %v785 = vpop.f32.mrb[0].mxu0
    %v786 = vadd.f32 0.0, %v785
    %787 = vdwg.mxu0
    %788 = vmatprep.subr.mxu0 %v715
    %789 = vmatpush1.msra.mxu0 %v712
    %790 = vmatprep.subr.mxu0 0.0
    %791 = vmatpush1.msra.mxu0 0.0
    %792 = vmatprep.subr.mxu0 0.0
    %793 = vmatpush1.msra.mxu0 0.0
    %794 = vmatprep.subr.mxu0 0.0
    %795 = vmatpush1.msra.mxu0 0.0
    %796 = vmatprep.subr.mxu0 0.0
    %797 = vmatpush1.msra.mxu0 0.0
    %798 = vmatprep.subr.mxu0 0.0
    %799 = vmatpush1.msra.mxu0 0.0
    %800 = vmatprep.subr.mxu0 0.0
    %801 = vmatpush1.msra.mxu0 0.0
    %802 = vmatprep.subr.mxu0 0.0
    %803 = vmatpush1.msra.mxu0 0.0
    %804 = vmatprep.subr.mxu0 0.0
    %805 = vmatpush1.msra.mxu0 0.0
    %806 = vmatprep.subr.mxu0 0.0
    %807 = vmatpush1.msra.mxu0 0.0
    %808 = vmatprep.subr.mxu0 0.0
    %809 = vmatpush1.msra.mxu0 0.0
    %810 = vmatprep.subr.mxu0 0.0
    %811 = vmatpush1.msra.mxu0 0.0
    %812 = vmatprep.subr.mxu0 0.0
    %813 = vmatpush1.msra.mxu0 0.0
    %814 = vmatprep.subr.mxu0 0.0
    %815 = vmatpush1.msra.mxu0 0.0
    %816 = vmatprep.subr.mxu0 0.0
    %817 = vmatpush1.msra.mxu0 0.0
    %818 = vmatprep.subr.mxu0 0.0
    %819 = vmatpush1.msra.mxu0 0.0
    %820 = vmatprep.subr.mxu0 0.0
    %821 = vmatpush1.msra.mxu0 0.0
    %822 = vmatprep.subr.mxu0 0.0
    %823 = vmatpush1.msra.mxu0 0.0
    %824 = vmatprep.subr.mxu0 0.0
    %825 = vmatpush1.msra.mxu0 0.0
    %826 = vmatprep.subr.mxu0 0.0
    %827 = vmatpush1.msra.mxu0 0.0
    %828 = vmatprep.subr.mxu0 0.0
    %829 = vmatpush1.msra.mxu0 0.0
    %830 = vmatprep.subr.mxu0 0.0
    %831 = vmatpush1.msra.mxu0 0.0
    %832 = vmatprep.subr.mxu0 0.0
    %833 = vmatpush1.msra.mxu0 0.0
    %834 = vmatprep.subr.mxu0 0.0
    %835 = vmatpush1.msra.mxu0 0.0
    %836 = vmatprep.subr.mxu0 0.0
    %837 = vmatpush1.msra.mxu0 0.0
    %838 = vmatprep.subr.mxu0 0.0
    %839 = vmatpush1.msra.mxu0 0.0
    %840 = vmatprep.subr.mxu0 0.0
    %841 = vmatpush1.msra.mxu0 0.0
    %842 = vmatprep.subr.mxu0 0.0
    %843 = vmatpush1.msra.mxu0 0.0
    %844 = vmatprep.subr.mxu0 0.0
    %845 = vmatpush1.msra.mxu0 0.0
    %846 = vmatprep.subr.mxu0 0.0
    %847 = vmatpush1.msra.mxu0 0.0
    %848 = vmatprep.subr.mxu0 0.0
    %849 = vmatpush1.msra.mxu0 0.0
    %850 = vmatprep.subr.mxu0 0.0
    %851 = vmatpush1.msra.mxu0 0.0
    %852 = vmatprep.mubr.f32.mxu0 0.0
    %853 = vmatmul.mubr.f32.gmra.mrb[0].mxu0 %v703
    %v854 = vpop.f32.mrb[0].mxu0
    %v855 = vadd.f32 0.0, %v854
    %v856 = vpop.f32.mrb[0].mxu0
    %v857 = vadd.f32 0.0, %v856
    %858 = vdwg.mxu0
    %v859 = vadd.f32 %v585, %v784
    %v860 = vadd.f32 %v587, %v786
    %v861 = vadd.f32 %v656, %v855
    %v862 = vadd.f32 %v658, %v857
    %863 = vrot.lane.b32.xlu0 %v257, 1
    %v864 = vpop.permute.xlu0 %863
    %865 = vrot.lane.b32.xlu0 %v258, 1
    %v866 = vpop.permute.xlu0 %865
    %867 = vrot.lane.b32.xlu0 %v259, 1
    %v868 = vpop.permute.xlu0 %867
    %869 = vrot.lane.b32.xlu0 %v260, 1
    %v870 = vpop.permute.xlu0 %869
    %vm871 = vcmp.lt.s32.totalorder %v270, 1
    %v872 = vsel %vm871, %v868, %v870
    %v873 = vsel %vm871, %v866, %v868
    %v874 = vsel %vm871, %v864, %v866
    %v875 = vsel %vm871, %v870, %v864
    %s876 = scalar_lea.vmem [#allocation2], 3
    %v877 = vld [vmem:[%s876] ss:$8 sm:$0xf]
    %v879 = vlaneseq
    %v880 = vshrl.u32 %v879, 7
    %v881 = vsub.s32 0, %v880
    %v882 = vrot.slane %v877, %v881
    %v883 = vlaneseq
    %v884 = vshrl.u32 %v883, 7
    %v885 = vsub.s32 1, %v884
    %v886 = vrot.slane %v877, %v885
    %v887 = vlaneseq
    %v888 = vshrl.u32 %v887, 7
    %v889 = vsub.s32 2, %v888
    %v890 = vrot.slane %v877, %v889
    %v891 = vlaneseq
    %v892 = vshrl.u32 %v891, 7
    %v893 = vsub.s32 3, %v892
    %v894 = vrot.slane %v877, %v893
    %v899 = vmul.f32 %v875, %v882
    %v900 = vmul.f32 %v874, %v886
    %v901 = vmul.f32 %v873, %v890
    %v902 = vmul.f32 %v872, %v894
    %s903 = scalar_lea.vmem %s2, 12
    %v904 = vld [vmem:[%s903] sm:$0xf]
    %v906 = vsel %vm345, %v904, 0
    %v909 = vsel %vm210, %v899, 0
    %v912 = vsel %vm210, %v900, 0
    %v915 = vsel %vm210, %v901, 0
    %v918 = vsel %vm210, %v902, 0
    %920 = vmatprep.subr.mxu0 %v912
    %921 = vmatpush1.msra.mxu0 %v909
    %922 = vmatprep.subr.mxu0 0.0
    %923 = vmatpush1.msra.mxu0 0.0
    %924 = vmatprep.subr.mxu0 0.0
    %925 = vmatpush1.msra.mxu0 0.0
    %926 = vmatprep.subr.mxu0 0.0
    %927 = vmatpush1.msra.mxu0 0.0
    %928 = vmatprep.subr.mxu0 0.0
    %929 = vmatpush1.msra.mxu0 0.0
    %930 = vmatprep.subr.mxu0 0.0
    %931 = vmatpush1.msra.mxu0 0.0
    %932 = vmatprep.subr.mxu0 0.0
    %933 = vmatpush1.msra.mxu0 0.0
    %934 = vmatprep.subr.mxu0 0.0
    %935 = vmatpush1.msra.mxu0 0.0
    %936 = vmatprep.subr.mxu0 0.0
    %937 = vmatpush1.msra.mxu0 0.0
    %938 = vmatprep.subr.mxu0 0.0
    %939 = vmatpush1.msra.mxu0 0.0
    %940 = vmatprep.subr.mxu0 0.0
    %941 = vmatpush1.msra.mxu0 0.0
    %942 = vmatprep.subr.mxu0 0.0
    %943 = vmatpush1.msra.mxu0 0.0
    %944 = vmatprep.subr.mxu0 0.0
    %945 = vmatpush1.msra.mxu0 0.0
    %946 = vmatprep.subr.mxu0 0.0
    %947 = vmatpush1.msra.mxu0 0.0
    %948 = vmatprep.subr.mxu0 0.0
    %949 = vmatpush1.msra.mxu0 0.0
    %950 = vmatprep.subr.mxu0 0.0
    %951 = vmatpush1.msra.mxu0 0.0
    %952 = vmatprep.subr.mxu0 0.0
    %953 = vmatpush1.msra.mxu0 0.0
    %954 = vmatprep.subr.mxu0 0.0
    %955 = vmatpush1.msra.mxu0 0.0
    %956 = vmatprep.subr.mxu0 0.0
    %957 = vmatpush1.msra.mxu0 0.0
    %958 = vmatprep.subr.mxu0 0.0
    %959 = vmatpush1.msra.mxu0 0.0
    %960 = vmatprep.subr.mxu0 0.0
    %961 = vmatpush1.msra.mxu0 0.0
    %962 = vmatprep.subr.mxu0 0.0
    %963 = vmatpush1.msra.mxu0 0.0
    %964 = vmatprep.subr.mxu0 0.0
    %965 = vmatpush1.msra.mxu0 0.0
    %966 = vmatprep.subr.mxu0 0.0
    %967 = vmatpush1.msra.mxu0 0.0
    %968 = vmatprep.subr.mxu0 0.0
    %969 = vmatpush1.msra.mxu0 0.0
    %970 = vmatprep.subr.mxu0 0.0
    %971 = vmatpush1.msra.mxu0 0.0
    %972 = vmatprep.subr.mxu0 0.0
    %973 = vmatpush1.msra.mxu0 0.0
    %974 = vmatprep.subr.mxu0 0.0
    %975 = vmatpush1.msra.mxu0 0.0
    %976 = vmatprep.subr.mxu0 0.0
    %977 = vmatpush1.msra.mxu0 0.0
    %978 = vmatprep.subr.mxu0 0.0
    %979 = vmatpush1.msra.mxu0 0.0
    %980 = vmatprep.subr.mxu0 0.0
    %981 = vmatpush1.msra.mxu0 0.0
    %982 = vmatprep.subr.mxu0 0.0
    %983 = vmatpush1.msra.mxu0 0.0
    %984 = vmatprep.mubr.f32.mxu0 0.0
    %985 = vmatmul.mubr.f32.gmra.mrb[0].mxu0 %v906
    %v986 = vpop.f32.mrb[0].mxu0
    %v987 = vadd.f32 0.0, %v986
    %v988 = vpop.f32.mrb[0].mxu0
    %v989 = vadd.f32 0.0, %v988
    %990 = vdwg.mxu0
    %991 = vmatprep.subr.mxu0 %v918
    %992 = vmatpush1.msra.mxu0 %v915
    %993 = vmatprep.subr.mxu0 0.0
    %994 = vmatpush1.msra.mxu0 0.0
    %995 = vmatprep.subr.mxu0 0.0
    %996 = vmatpush1.msra.mxu0 0.0
    %997 = vmatprep.subr.mxu0 0.0
    %998 = vmatpush1.msra.mxu0 0.0
    %999 = vmatprep.subr.mxu0 0.0
    %1000 = vmatpush1.msra.mxu0 0.0
    %1001 = vmatprep.subr.mxu0 0.0
    %1002 = vmatpush1.msra.mxu0 0.0
    %1003 = vmatprep.subr.mxu0 0.0
    %1004 = vmatpush1.msra.mxu0 0.0
    %1005 = vmatprep.subr.mxu0 0.0
    %1006 = vmatpush1.msra.mxu0 0.0
    %1007 = vmatprep.subr.mxu0 0.0
    %1008 = vmatpush1.msra.mxu0 0.0
    %1009 = vmatprep.subr.mxu0 0.0
    %1010 = vmatpush1.msra.mxu0 0.0
    %1011 = vmatprep.subr.mxu0 0.0
    %1012 = vmatpush1.msra.mxu0 0.0
    %1013 = vmatprep.subr.mxu0 0.0
    %1014 = vmatpush1.msra.mxu0 0.0
    %1015 = vmatprep.subr.mxu0 0.0
    %1016 = vmatpush1.msra.mxu0 0.0
    %1017 = vmatprep.subr.mxu0 0.0
    %1018 = vmatpush1.msra.mxu0 0.0
    %1019 = vmatprep.subr.mxu0 0.0
    %1020 = vmatpush1.msra.mxu0 0.0
    %1021 = vmatprep.subr.mxu0 0.0
    %1022 = vmatpush1.msra.mxu0 0.0
    %1023 = vmatprep.subr.mxu0 0.0
    %1024 = vmatpush1.msra.mxu0 0.0
    %1025 = vmatprep.subr.mxu0 0.0
    %1026 = vmatpush1.msra.mxu0 0.0
    %1027 = vmatprep.subr.mxu0 0.0
    %1028 = vmatpush1.msra.mxu0 0.0
    %1029 = vmatprep.subr.mxu0 0.0
    %1030 = vmatpush1.msra.mxu0 0.0
    %1031 = vmatprep.subr.mxu0 0.0
    %1032 = vmatpush1.msra.mxu0 0.0
    %1033 = vmatprep.subr.mxu0 0.0
    %1034 = vmatpush1.msra.mxu0 0.0
    %1035 = vmatprep.subr.mxu0 0.0
    %1036 = vmatpush1.msra.mxu0 0.0
    %1037 = vmatprep.subr.mxu0 0.0
    %1038 = vmatpush1.msra.mxu0 0.0
    %1039 = vmatprep.subr.mxu0 0.0
    %1040 = vmatpush1.msra.mxu0 0.0
    %1041 = vmatprep.subr.mxu0 0.0
    %1042 = vmatpush1.msra.mxu0 0.0
    %1043 = vmatprep.subr.mxu0 0.0
    %1044 = vmatpush1.msra.mxu0 0.0
    %1045 = vmatprep.subr.mxu0 0.0
    %1046 = vmatpush1.msra.mxu0 0.0
    %1047 = vmatprep.subr.mxu0 0.0
    %1048 = vmatpush1.msra.mxu0 0.0
    %1049 = vmatprep.subr.mxu0 0.0
    %1050 = vmatpush1.msra.mxu0 0.0
    %1051 = vmatprep.subr.mxu0 0.0
    %1052 = vmatpush1.msra.mxu0 0.0
    %1053 = vmatprep.subr.mxu0 0.0
    %1054 = vmatpush1.msra.mxu0 0.0
    %1055 = vmatprep.mubr.f32.mxu0 0.0
    %1056 = vmatmul.mubr.f32.gmra.mrb[0].mxu0 %v906
    %v1057 = vpop.f32.mrb[0].mxu0
    %v1058 = vadd.f32 0.0, %v1057
    %v1059 = vpop.f32.mrb[0].mxu0
    %v1060 = vadd.f32 0.0, %v1059
    %1061 = vdwg.mxu0
    %v1062 = vadd.f32 %v859, %v987
    %v1063 = vadd.f32 %v860, %v989
    %v1064 = vadd.f32 %v861, %v1058
    %v1065 = vadd.f32 %v862, %v1060
    %s1066 = scalar_lea.vmem %s2, 16
    %v1067 = vld [vmem:[%s1066] sm:$0xf]
    %v1069 = vsel %vm345, %v1067, 0
    %v1072 = vsel %vm210, %v257, 0
    %v1075 = vsel %vm210, %v258, 0
    %v1078 = vsel %vm210, %v259, 0
    %v1081 = vsel %vm210, %v260, 0
    %1083 = vmatprep.subr.mxu0 %v1075
    %1084 = vmatpush1.msra.mxu0 %v1072
    %1085 = vmatprep.subr.mxu0 0.0
    %1086 = vmatpush1.msra.mxu0 0.0
    %1087 = vmatprep.subr.mxu0 0.0
    %1088 = vmatpush1.msra.mxu0 0.0
    %1089 = vmatprep.subr.mxu0 0.0
    %1090 = vmatpush1.msra.mxu0 0.0
    %1091 = vmatprep.subr.mxu0 0.0
    %1092 = vmatpush1.msra.mxu0 0.0
    %1093 = vmatprep.subr.mxu0 0.0
    %1094 = vmatpush1.msra.mxu0 0.0
    %1095 = vmatprep.subr.mxu0 0.0
    %1096 = vmatpush1.msra.mxu0 0.0
    %1097 = vmatprep.subr.mxu0 0.0
    %1098 = vmatpush1.msra.mxu0 0.0
    %1099 = vmatprep.subr.mxu0 0.0
    %1100 = vmatpush1.msra.mxu0 0.0
    %1101 = vmatprep.subr.mxu0 0.0
    %1102 = vmatpush1.msra.mxu0 0.0
    %1103 = vmatprep.subr.mxu0 0.0
    %1104 = vmatpush1.msra.mxu0 0.0
    %1105 = vmatprep.subr.mxu0 0.0
    %1106 = vmatpush1.msra.mxu0 0.0
    %1107 = vmatprep.subr.mxu0 0.0
    %1108 = vmatpush1.msra.mxu0 0.0
    %1109 = vmatprep.subr.mxu0 0.0
    %1110 = vmatpush1.msra.mxu0 0.0
    %1111 = vmatprep.subr.mxu0 0.0
    %1112 = vmatpush1.msra.mxu0 0.0
    %1113 = vmatprep.subr.mxu0 0.0
    %1114 = vmatpush1.msra.mxu0 0.0
    %1115 = vmatprep.subr.mxu0 0.0
    %1116 = vmatpush1.msra.mxu0 0.0
    %1117 = vmatprep.subr.mxu0 0.0
    %1118 = vmatpush1.msra.mxu0 0.0
    %1119 = vmatprep.subr.mxu0 0.0
    %1120 = vmatpush1.msra.mxu0 0.0
    %1121 = vmatprep.subr.mxu0 0.0
    %1122 = vmatpush1.msra.mxu0 0.0
    %1123 = vmatprep.subr.mxu0 0.0
    %1124 = vmatpush1.msra.mxu0 0.0
    %1125 = vmatprep.subr.mxu0 0.0
    %1126 = vmatpush1.msra.mxu0 0.0
    %1127 = vmatprep.subr.mxu0 0.0
    %1128 = vmatpush1.msra.mxu0 0.0
    %1129 = vmatprep.subr.mxu0 0.0
    %1130 = vmatpush1.msra.mxu0 0.0
    %1131 = vmatprep.subr.mxu0 0.0
    %1132 = vmatpush1.msra.mxu0 0.0
    %1133 = vmatprep.subr.mxu0 0.0
    %1134 = vmatpush1.msra.mxu0 0.0
    %1135 = vmatprep.subr.mxu0 0.0
    %1136 = vmatpush1.msra.mxu0 0.0
    %1137 = vmatprep.subr.mxu0 0.0
    %1138 = vmatpush1.msra.mxu0 0.0
    %1139 = vmatprep.subr.mxu0 0.0
    %1140 = vmatpush1.msra.mxu0 0.0
    %1141 = vmatprep.subr.mxu0 0.0
    %1142 = vmatpush1.msra.mxu0 0.0
    %1143 = vmatprep.subr.mxu0 0.0
    %1144 = vmatpush1.msra.mxu0 0.0
    %1145 = vmatprep.subr.mxu0 0.0
    %1146 = vmatpush1.msra.mxu0 0.0
    %1147 = vmatprep.mubr.f32.mxu0 0.0
    %1148 = vmatmul.mubr.f32.gmra.mrb[0].mxu0 %v1069
    %v1149 = vpop.f32.mrb[0].mxu0
    %v1150 = vadd.f32 0.0, %v1149
    %v1151 = vpop.f32.mrb[0].mxu0
    %v1152 = vadd.f32 0.0, %v1151
    %1153 = vdwg.mxu0
    %1154 = vmatprep.subr.mxu0 %v1081
    %1155 = vmatpush1.msra.mxu0 %v1078
    %1156 = vmatprep.subr.mxu0 0.0
    %1157 = vmatpush1.msra.mxu0 0.0
    %1158 = vmatprep.subr.mxu0 0.0
    %1159 = vmatpush1.msra.mxu0 0.0
    %1160 = vmatprep.subr.mxu0 0.0
    %1161 = vmatpush1.msra.mxu0 0.0
    %1162 = vmatprep.subr.mxu0 0.0
    %1163 = vmatpush1.msra.mxu0 0.0
    %1164 = vmatprep.subr.mxu0 0.0
    %1165 = vmatpush1.msra.mxu0 0.0
    %1166 = vmatprep.subr.mxu0 0.0
    %1167 = vmatpush1.msra.mxu0 0.0
    %1168 = vmatprep.subr.mxu0 0.0
    %1169 = vmatpush1.msra.mxu0 0.0
    %1170 = vmatprep.subr.mxu0 0.0
    %1171 = vmatpush1.msra.mxu0 0.0
    %1172 = vmatprep.subr.mxu0 0.0
    %1173 = vmatpush1.msra.mxu0 0.0
    %1174 = vmatprep.subr.mxu0 0.0
    %1175 = vmatpush1.msra.mxu0 0.0
    %1176 = vmatprep.subr.mxu0 0.0
    %1177 = vmatpush1.msra.mxu0 0.0
    %1178 = vmatprep.subr.mxu0 0.0
    %1179 = vmatpush1.msra.mxu0 0.0
    %1180 = vmatprep.subr.mxu0 0.0
    %1181 = vmatpush1.msra.mxu0 0.0
    %1182 = vmatprep.subr.mxu0 0.0
    %1183 = vmatpush1.msra.mxu0 0.0
    %1184 = vmatprep.subr.mxu0 0.0
    %1185 = vmatpush1.msra.mxu0 0.0
    %1186 = vmatprep.subr.mxu0 0.0
    %1187 = vmatpush1.msra.mxu0 0.0
    %1188 = vmatprep.subr.mxu0 0.0
    %1189 = vmatpush1.msra.mxu0 0.0
    %1190 = vmatprep.subr.mxu0 0.0
    %1191 = vmatpush1.msra.mxu0 0.0
    %1192 = vmatprep.subr.mxu0 0.0
    %1193 = vmatpush1.msra.mxu0 0.0
    %1194 = vmatprep.subr.mxu0 0.0
    %1195 = vmatpush1.msra.mxu0 0.0
    %1196 = vmatprep.subr.mxu0 0.0
    %1197 = vmatpush1.msra.mxu0 0.0
    %1198 = vmatprep.subr.mxu0 0.0
    %1199 = vmatpush1.msra.mxu0 0.0
    %1200 = vmatprep.subr.mxu0 0.0
    %1201 = vmatpush1.msra.mxu0 0.0
    %1202 = vmatprep.subr.mxu0 0.0
    %1203 = vmatpush1.msra.mxu0 0.0
    %1204 = vmatprep.subr.mxu0 0.0
    %1205 = vmatpush1.msra.mxu0 0.0
    %1206 = vmatprep.subr.mxu0 0.0
    %1207 = vmatpush1.msra.mxu0 0.0
    %1208 = vmatprep.subr.mxu0 0.0
    %1209 = vmatpush1.msra.mxu0 0.0
    %1210 = vmatprep.subr.mxu0 0.0
    %1211 = vmatpush1.msra.mxu0 0.0
    %1212 = vmatprep.subr.mxu0 0.0
    %1213 = vmatpush1.msra.mxu0 0.0
    %1214 = vmatprep.subr.mxu0 0.0
    %1215 = vmatpush1.msra.mxu0 0.0
    %1216 = vmatprep.subr.mxu0 0.0
    %1217 = vmatpush1.msra.mxu0 0.0
    %1218 = vmatprep.mubr.f32.mxu0 0.0
    %1219 = vmatmul.mubr.f32.gmra.mrb[0].mxu0 %v1069
    %v1220 = vpop.f32.mrb[0].mxu0
    %v1221 = vadd.f32 0.0, %v1220
    %v1222 = vpop.f32.mrb[0].mxu0
    %v1223 = vadd.f32 0.0, %v1222
    %1224 = vdwg.mxu0
    %v1225 = vadd.f32 %v1062, %v1150
    %v1226 = vadd.f32 %v1063, %v1152
    %v1227 = vadd.f32 %v1064, %v1221
    %v1228 = vadd.f32 %v1065, %v1223
    %1229 = vrot.lane.b32.xlu0 %v257, 127
    %v1230 = vpop.permute.xlu0 %1229
    %1231 = vrot.lane.b32.xlu0 %v258, 127
    %v1232 = vpop.permute.xlu0 %1231
    %1233 = vrot.lane.b32.xlu0 %v259, 127
    %v1234 = vpop.permute.xlu0 %1233
    %1235 = vrot.lane.b32.xlu0 %v260, 127
    %v1236 = vpop.permute.xlu0 %1235
    %vm1237 = vcmp.lt.s32.totalorder %v270, 127
    %v1238 = vsel %vm1237, %v1234, %v1236
    %v1239 = vsel %vm1237, %v1232, %v1234
    %v1240 = vsel %vm1237, %v1230, %v1232
    %v1241 = vsel %vm1237, %v1236, %v1230
    %s1242 = scalar_lea.vmem [#allocation2], 5
    %v1243 = vld [vmem:[%s1242] ss:$8 sm:$0xf]
    %v1245 = vlaneseq
    %v1246 = vshrl.u32 %v1245, 7
    %v1247 = vsub.s32 0, %v1246
    %v1248 = vrot.slane %v1243, %v1247
    %v1249 = vlaneseq
    %v1250 = vshrl.u32 %v1249, 7
    %v1251 = vsub.s32 1, %v1250
    %v1252 = vrot.slane %v1243, %v1251
    %v1253 = vlaneseq
    %v1254 = vshrl.u32 %v1253, 7
    %v1255 = vsub.s32 2, %v1254
    %v1256 = vrot.slane %v1243, %v1255
    %v1257 = vlaneseq
    %v1258 = vshrl.u32 %v1257, 7
    %v1259 = vsub.s32 3, %v1258
    %v1260 = vrot.slane %v1243, %v1259
    %v1265 = vmul.f32 %v1240, %v1248
    %v1266 = vmul.f32 %v1239, %v1252
    %v1267 = vmul.f32 %v1238, %v1256
    %v1268 = vmul.f32 %v1241, %v1260
    %s1269 = scalar_lea.vmem %s2, 20
    %v1270 = vld [vmem:[%s1269] sm:$0xf]
    %v1272 = vsel %vm345, %v1270, 0
    %v1275 = vsel %vm210, %v1265, 0
    %v1278 = vsel %vm210, %v1266, 0
    %v1281 = vsel %vm210, %v1267, 0
    %v1284 = vsel %vm210, %v1268, 0
    %1286 = vmatprep.subr.mxu0 %v1278
    %1287 = vmatpush1.msra.mxu0 %v1275
    %1288 = vmatprep.subr.mxu0 0.0
    %1289 = vmatpush1.msra.mxu0 0.0
    %1290 = vmatprep.subr.mxu0 0.0
    %1291 = vmatpush1.msra.mxu0 0.0
    %1292 = vmatprep.subr.mxu0 0.0
    %1293 = vmatpush1.msra.mxu0 0.0
    %1294 = vmatprep.subr.mxu0 0.0
    %1295 = vmatpush1.msra.mxu0 0.0
    %1296 = vmatprep.subr.mxu0 0.0
    %1297 = vmatpush1.msra.mxu0 0.0
    %1298 = vmatprep.subr.mxu0 0.0
    %1299 = vmatpush1.msra.mxu0 0.0
    %1300 = vmatprep.subr.mxu0 0.0
    %1301 = vmatpush1.msra.mxu0 0.0
    %1302 = vmatprep.subr.mxu0 0.0
    %1303 = vmatpush1.msra.mxu0 0.0
    %1304 = vmatprep.subr.mxu0 0.0
    %1305 = vmatpush1.msra.mxu0 0.0
    %1306 = vmatprep.subr.mxu0 0.0
    %1307 = vmatpush1.msra.mxu0 0.0
    %1308 = vmatprep.subr.mxu0 0.0
    %1309 = vmatpush1.msra.mxu0 0.0
    %1310 = vmatprep.subr.mxu0 0.0
    %1311 = vmatpush1.msra.mxu0 0.0
    %1312 = vmatprep.subr.mxu0 0.0
    %1313 = vmatpush1.msra.mxu0 0.0
    %1314 = vmatprep.subr.mxu0 0.0
    %1315 = vmatpush1.msra.mxu0 0.0
    %1316 = vmatprep.subr.mxu0 0.0
    %1317 = vmatpush1.msra.mxu0 0.0
    %1318 = vmatprep.subr.mxu0 0.0
    %1319 = vmatpush1.msra.mxu0 0.0
    %1320 = vmatprep.subr.mxu0 0.0
    %1321 = vmatpush1.msra.mxu0 0.0
    %1322 = vmatprep.subr.mxu0 0.0
    %1323 = vmatpush1.msra.mxu0 0.0
    %1324 = vmatprep.subr.mxu0 0.0
    %1325 = vmatpush1.msra.mxu0 0.0
    %1326 = vmatprep.subr.mxu0 0.0
    %1327 = vmatpush1.msra.mxu0 0.0
    %1328 = vmatprep.subr.mxu0 0.0
    %1329 = vmatpush1.msra.mxu0 0.0
    %1330 = vmatprep.subr.mxu0 0.0
    %1331 = vmatpush1.msra.mxu0 0.0
    %1332 = vmatprep.subr.mxu0 0.0
    %1333 = vmatpush1.msra.mxu0 0.0
    %1334 = vmatprep.subr.mxu0 0.0
    %1335 = vmatpush1.msra.mxu0 0.0
    %1336 = vmatprep.subr.mxu0 0.0
    %1337 = vmatpush1.msra.mxu0 0.0
    %1338 = vmatprep.subr.mxu0 0.0
    %1339 = vmatpush1.msra.mxu0 0.0
    %1340 = vmatprep.subr.mxu0 0.0
    %1341 = vmatpush1.msra.mxu0 0.0
    %1342 = vmatprep.subr.mxu0 0.0
    %1343 = vmatpush1.msra.mxu0 0.0
    %1344 = vmatprep.subr.mxu0 0.0
    %1345 = vmatpush1.msra.mxu0 0.0
    %1346 = vmatprep.subr.mxu0 0.0
    %1347 = vmatpush1.msra.mxu0 0.0
    %1348 = vmatprep.subr.mxu0 0.0
    %1349 = vmatpush1.msra.mxu0 0.0
    %1350 = vmatprep.mubr.f32.mxu0 0.0
    %1351 = vmatmul.mubr.f32.gmra.mrb[0].mxu0 %v1272
    %v1352 = vpop.f32.mrb[0].mxu0
    %v1353 = vadd.f32 0.0, %v1352
    %v1354 = vpop.f32.mrb[0].mxu0
    %v1355 = vadd.f32 0.0, %v1354
    %1356 = vdwg.mxu0
    %1357 = vmatprep.subr.mxu0 %v1284
    %1358 = vmatpush1.msra.mxu0 %v1281
    %1359 = vmatprep.subr.mxu0 0.0
    %1360 = vmatpush1.msra.mxu0 0.0
    %1361 = vmatprep.subr.mxu0 0.0
    %1362 = vmatpush1.msra.mxu0 0.0
    %1363 = vmatprep.subr.mxu0 0.0
    %1364 = vmatpush1.msra.mxu0 0.0
    %1365 = vmatprep.subr.mxu0 0.0
    %1366 = vmatpush1.msra.mxu0 0.0
    %1367 = vmatprep.subr.mxu0 0.0
    %1368 = vmatpush1.msra.mxu0 0.0
    %1369 = vmatprep.subr.mxu0 0.0
    %1370 = vmatpush1.msra.mxu0 0.0
    %1371 = vmatprep.subr.mxu0 0.0
    %1372 = vmatpush1.msra.mxu0 0.0
    %1373 = vmatprep.subr.mxu0 0.0
    %1374 = vmatpush1.msra.mxu0 0.0
    %1375 = vmatprep.subr.mxu0 0.0
    %1376 = vmatpush1.msra.mxu0 0.0
    %1377 = vmatprep.subr.mxu0 0.0
    %1378 = vmatpush1.msra.mxu0 0.0
    %1379 = vmatprep.subr.mxu0 0.0
    %1380 = vmatpush1.msra.mxu0 0.0
    %1381 = vmatprep.subr.mxu0 0.0
    %1382 = vmatpush1.msra.mxu0 0.0
    %1383 = vmatprep.subr.mxu0 0.0
    %1384 = vmatpush1.msra.mxu0 0.0
    %1385 = vmatprep.subr.mxu0 0.0
    %1386 = vmatpush1.msra.mxu0 0.0
    %1387 = vmatprep.subr.mxu0 0.0
    %1388 = vmatpush1.msra.mxu0 0.0
    %1389 = vmatprep.subr.mxu0 0.0
    %1390 = vmatpush1.msra.mxu0 0.0
    %1391 = vmatprep.subr.mxu0 0.0
    %1392 = vmatpush1.msra.mxu0 0.0
    %1393 = vmatprep.subr.mxu0 0.0
    %1394 = vmatpush1.msra.mxu0 0.0
    %1395 = vmatprep.subr.mxu0 0.0
    %1396 = vmatpush1.msra.mxu0 0.0
    %1397 = vmatprep.subr.mxu0 0.0
    %1398 = vmatpush1.msra.mxu0 0.0
    %1399 = vmatprep.subr.mxu0 0.0
    %1400 = vmatpush1.msra.mxu0 0.0
    %1401 = vmatprep.subr.mxu0 0.0
    %1402 = vmatpush1.msra.mxu0 0.0
    %1403 = vmatprep.subr.mxu0 0.0
    %1404 = vmatpush1.msra.mxu0 0.0
    %1405 = vmatprep.subr.mxu0 0.0
    %1406 = vmatpush1.msra.mxu0 0.0
    %1407 = vmatprep.subr.mxu0 0.0
    %1408 = vmatpush1.msra.mxu0 0.0
    %1409 = vmatprep.subr.mxu0 0.0
    %1410 = vmatpush1.msra.mxu0 0.0
    %1411 = vmatprep.subr.mxu0 0.0
    %1412 = vmatpush1.msra.mxu0 0.0
    %1413 = vmatprep.subr.mxu0 0.0
    %1414 = vmatpush1.msra.mxu0 0.0
    %1415 = vmatprep.subr.mxu0 0.0
    %1416 = vmatpush1.msra.mxu0 0.0
    %1417 = vmatprep.subr.mxu0 0.0
    %1418 = vmatpush1.msra.mxu0 0.0
    %1419 = vmatprep.subr.mxu0 0.0
    %1420 = vmatpush1.msra.mxu0 0.0
    %1421 = vmatprep.mubr.f32.mxu0 0.0
    %1422 = vmatmul.mubr.f32.gmra.mrb[0].mxu0 %v1272
    %v1423 = vpop.f32.mrb[0].mxu0
    %v1424 = vadd.f32 0.0, %v1423
    %v1425 = vpop.f32.mrb[0].mxu0
    %v1426 = vadd.f32 0.0, %v1425
    %1427 = vdwg.mxu0
    %v1428 = vadd.f32 %v1225, %v1353
    %v1429 = vadd.f32 %v1226, %v1355
    %v1430 = vadd.f32 %v1227, %v1424
    %v1431 = vadd.f32 %v1228, %v1426
    %1432 = vrot.lane.b32.xlu0 %v257, 113
    %v1433 = vpop.permute.xlu0 %1432
    %1434 = vrot.lane.b32.xlu0 %v258, 113
    %v1435 = vpop.permute.xlu0 %1434
    %1436 = vrot.lane.b32.xlu0 %v259, 113
    %v1437 = vpop.permute.xlu0 %1436
    %1438 = vrot.lane.b32.xlu0 %v260, 113
    %v1439 = vpop.permute.xlu0 %1438
    %vm1440 = vcmp.lt.s32.totalorder %v270, 113
    %v1441 = vsel %vm1440, %v1437, %v1439
    %v1442 = vsel %vm1440, %v1435, %v1437
    %v1443 = vsel %vm1440, %v1433, %v1435
    %v1444 = vsel %vm1440, %v1439, %v1433
    %s1445 = scalar_lea.vmem [#allocation2], 6
    %v1446 = vld [vmem:[%s1445] ss:$8 sm:$0xf]
    %v1448 = vlaneseq
    %v1449 = vshrl.u32 %v1448, 7
    %v1450 = vsub.s32 0, %v1449
    %v1451 = vrot.slane %v1446, %v1450
    %v1452 = vlaneseq
    %v1453 = vshrl.u32 %v1452, 7
    %v1454 = vsub.s32 1, %v1453
    %v1455 = vrot.slane %v1446, %v1454
    %v1456 = vlaneseq
    %v1457 = vshrl.u32 %v1456, 7
    %v1458 = vsub.s32 2, %v1457
    %v1459 = vrot.slane %v1446, %v1458
    %v1460 = vlaneseq
    %v1461 = vshrl.u32 %v1460, 7
    %v1462 = vsub.s32 3, %v1461
    %v1463 = vrot.slane %v1446, %v1462
    %v1468 = vmul.f32 %v1443, %v1451
    %v1469 = vmul.f32 %v1442, %v1455
    %v1470 = vmul.f32 %v1441, %v1459
    %v1471 = vmul.f32 %v1444, %v1463
    %s1472 = scalar_lea.vmem %s2, 24
    %v1473 = vld [vmem:[%s1472] sm:$0xf]
    %v1475 = vsel %vm345, %v1473, 0
    %v1478 = vsel %vm210, %v1468, 0
    %v1481 = vsel %vm210, %v1469, 0
    %v1484 = vsel %vm210, %v1470, 0
    %v1487 = vsel %vm210, %v1471, 0
    %1489 = vmatprep.subr.mxu0 %v1481
    %1490 = vmatpush1.msra.mxu0 %v1478
    %1491 = vmatprep.subr.mxu0 0.0
    %1492 = vmatpush1.msra.mxu0 0.0
    %1493 = vmatprep.subr.mxu0 0.0
    %1494 = vmatpush1.msra.mxu0 0.0
    %1495 = vmatprep.subr.mxu0 0.0
    %1496 = vmatpush1.msra.mxu0 0.0
    %1497 = vmatprep.subr.mxu0 0.0
    %1498 = vmatpush1.msra.mxu0 0.0
    %1499 = vmatprep.subr.mxu0 0.0
    %1500 = vmatpush1.msra.mxu0 0.0
    %1501 = vmatprep.subr.mxu0 0.0
    %1502 = vmatpush1.msra.mxu0 0.0
    %1503 = vmatprep.subr.mxu0 0.0
    %1504 = vmatpush1.msra.mxu0 0.0
    %1505 = vmatprep.subr.mxu0 0.0
    %1506 = vmatpush1.msra.mxu0 0.0
    %1507 = vmatprep.subr.mxu0 0.0
    %1508 = vmatpush1.msra.mxu0 0.0
    %1509 = vmatprep.subr.mxu0 0.0
    %1510 = vmatpush1.msra.mxu0 0.0
    %1511 = vmatprep.subr.mxu0 0.0
    %1512 = vmatpush1.msra.mxu0 0.0
    %1513 = vmatprep.subr.mxu0 0.0
    %1514 = vmatpush1.msra.mxu0 0.0
    %1515 = vmatprep.subr.mxu0 0.0
    %1516 = vmatpush1.msra.mxu0 0.0
    %1517 = vmatprep.subr.mxu0 0.0
    %1518 = vmatpush1.msra.mxu0 0.0
    %1519 = vmatprep.subr.mxu0 0.0
    %1520 = vmatpush1.msra.mxu0 0.0
    %1521 = vmatprep.subr.mxu0 0.0
    %1522 = vmatpush1.msra.mxu0 0.0
    %1523 = vmatprep.subr.mxu0 0.0
    %1524 = vmatpush1.msra.mxu0 0.0
    %1525 = vmatprep.subr.mxu0 0.0
    %1526 = vmatpush1.msra.mxu0 0.0
    %1527 = vmatprep.subr.mxu0 0.0
    %1528 = vmatpush1.msra.mxu0 0.0
    %1529 = vmatprep.subr.mxu0 0.0
    %1530 = vmatpush1.msra.mxu0 0.0
    %1531 = vmatprep.subr.mxu0 0.0
    %1532 = vmatpush1.msra.mxu0 0.0
    %1533 = vmatprep.subr.mxu0 0.0
    %1534 = vmatpush1.msra.mxu0 0.0
    %1535 = vmatprep.subr.mxu0 0.0
    %1536 = vmatpush1.msra.mxu0 0.0
    %1537 = vmatprep.subr.mxu0 0.0
    %1538 = vmatpush1.msra.mxu0 0.0
    %1539 = vmatprep.subr.mxu0 0.0
    %1540 = vmatpush1.msra.mxu0 0.0
    %1541 = vmatprep.subr.mxu0 0.0
    %1542 = vmatpush1.msra.mxu0 0.0
    %1543 = vmatprep.subr.mxu0 0.0
    %1544 = vmatpush1.msra.mxu0 0.0
    %1545 = vmatprep.subr.mxu0 0.0
    %1546 = vmatpush1.msra.mxu0 0.0
    %1547 = vmatprep.subr.mxu0 0.0
    %1548 = vmatpush1.msra.mxu0 0.0
    %1549 = vmatprep.subr.mxu0 0.0
    %1550 = vmatpush1.msra.mxu0 0.0
    %1551 = vmatprep.subr.mxu0 0.0
    %1552 = vmatpush1.msra.mxu0 0.0
    %1553 = vmatprep.mubr.f32.mxu0 0.0
    %1554 = vmatmul.mubr.f32.gmra.mrb[0].mxu0 %v1475
    %v1555 = vpop.f32.mrb[0].mxu0
    %v1556 = vadd.f32 0.0, %v1555
    %v1557 = vpop.f32.mrb[0].mxu0
    %v1558 = vadd.f32 0.0, %v1557
    %1559 = vdwg.mxu0
    %1560 = vmatprep.subr.mxu0 %v1487
    %1561 = vmatpush1.msra.mxu0 %v1484
    %1562 = vmatprep.subr.mxu0 0.0
    %1563 = vmatpush1.msra.mxu0 0.0
    %1564 = vmatprep.subr.mxu0 0.0
    %1565 = vmatpush1.msra.mxu0 0.0
    %1566 = vmatprep.subr.mxu0 0.0
    %1567 = vmatpush1.msra.mxu0 0.0
    %1568 = vmatprep.subr.mxu0 0.0
    %1569 = vmatpush1.msra.mxu0 0.0
    %1570 = vmatprep.subr.mxu0 0.0
    %1571 = vmatpush1.msra.mxu0 0.0
    %1572 = vmatprep.subr.mxu0 0.0
    %1573 = vmatpush1.msra.mxu0 0.0
    %1574 = vmatprep.subr.mxu0 0.0
    %1575 = vmatpush1.msra.mxu0 0.0
    %1576 = vmatprep.subr.mxu0 0.0
    %1577 = vmatpush1.msra.mxu0 0.0
    %1578 = vmatprep.subr.mxu0 0.0
    %1579 = vmatpush1.msra.mxu0 0.0
    %1580 = vmatprep.subr.mxu0 0.0
    %1581 = vmatpush1.msra.mxu0 0.0
    %1582 = vmatprep.subr.mxu0 0.0
    %1583 = vmatpush1.msra.mxu0 0.0
    %1584 = vmatprep.subr.mxu0 0.0
    %1585 = vmatpush1.msra.mxu0 0.0
    %1586 = vmatprep.subr.mxu0 0.0
    %1587 = vmatpush1.msra.mxu0 0.0
    %1588 = vmatprep.subr.mxu0 0.0
    %1589 = vmatpush1.msra.mxu0 0.0
    %1590 = vmatprep.subr.mxu0 0.0
    %1591 = vmatpush1.msra.mxu0 0.0
    %1592 = vmatprep.subr.mxu0 0.0
    %1593 = vmatpush1.msra.mxu0 0.0
    %1594 = vmatprep.subr.mxu0 0.0
    %1595 = vmatpush1.msra.mxu0 0.0
    %1596 = vmatprep.subr.mxu0 0.0
    %1597 = vmatpush1.msra.mxu0 0.0
    %1598 = vmatprep.subr.mxu0 0.0
    %1599 = vmatpush1.msra.mxu0 0.0
    %1600 = vmatprep.subr.mxu0 0.0
    %1601 = vmatpush1.msra.mxu0 0.0
    %1602 = vmatprep.subr.mxu0 0.0
    %1603 = vmatpush1.msra.mxu0 0.0
    %1604 = vmatprep.subr.mxu0 0.0
    %1605 = vmatpush1.msra.mxu0 0.0
    %1606 = vmatprep.subr.mxu0 0.0
    %1607 = vmatpush1.msra.mxu0 0.0
    %1608 = vmatprep.subr.mxu0 0.0
    %1609 = vmatpush1.msra.mxu0 0.0
    %1610 = vmatprep.subr.mxu0 0.0
    %1611 = vmatpush1.msra.mxu0 0.0
    %1612 = vmatprep.subr.mxu0 0.0
    %1613 = vmatpush1.msra.mxu0 0.0
    %1614 = vmatprep.subr.mxu0 0.0
    %1615 = vmatpush1.msra.mxu0 0.0
    %1616 = vmatprep.subr.mxu0 0.0
    %1617 = vmatpush1.msra.mxu0 0.0
    %1618 = vmatprep.subr.mxu0 0.0
    %1619 = vmatpush1.msra.mxu0 0.0
    %1620 = vmatprep.subr.mxu0 0.0
    %1621 = vmatpush1.msra.mxu0 0.0
    %1622 = vmatprep.subr.mxu0 0.0
    %1623 = vmatpush1.msra.mxu0 0.0
    %1624 = vmatprep.mubr.f32.mxu0 0.0
    %1625 = vmatmul.mubr.f32.gmra.mrb[0].mxu0 %v1475
    %v1626 = vpop.f32.mrb[0].mxu0
    %v1627 = vadd.f32 0.0, %v1626
    %v1628 = vpop.f32.mrb[0].mxu0
    %v1629 = vadd.f32 0.0, %v1628
    %1630 = vdwg.mxu0
    %v1631 = vadd.f32 %v1428, %v1556
    %v1632 = vadd.f32 %v1429, %v1558
    %v1633 = vadd.f32 %v1430, %v1627
    %v1634 = vadd.f32 %v1431, %v1629
    %1635 = vrot.lane.b32.xlu0 %v257, 112
    %v1636 = vpop.permute.xlu0 %1635
    %1637 = vrot.lane.b32.xlu0 %v258, 112
    %v1638 = vpop.permute.xlu0 %1637
    %1639 = vrot.lane.b32.xlu0 %v259, 112
    %v1640 = vpop.permute.xlu0 %1639
    %1641 = vrot.lane.b32.xlu0 %v260, 112
    %v1642 = vpop.permute.xlu0 %1641
    %vm1643 = vcmp.lt.s32.totalorder %v270, 112
    %v1644 = vsel %vm1643, %v1640, %v1642
    %v1645 = vsel %vm1643, %v1638, %v1640
    %v1646 = vsel %vm1643, %v1636, %v1638
    %v1647 = vsel %vm1643, %v1642, %v1636
    %s1648 = scalar_lea.vmem [#allocation2], 7
    %v1649 = vld [vmem:[%s1648] ss:$8 sm:$0xf]
    %v1651 = vlaneseq
    %v1652 = vshrl.u32 %v1651, 7
    %v1653 = vsub.s32 0, %v1652
    %v1654 = vrot.slane %v1649, %v1653
    %v1655 = vlaneseq
    %v1656 = vshrl.u32 %v1655, 7
    %v1657 = vsub.s32 1, %v1656
    %v1658 = vrot.slane %v1649, %v1657
    %v1659 = vlaneseq
    %v1660 = vshrl.u32 %v1659, 7
    %v1661 = vsub.s32 2, %v1660
    %v1662 = vrot.slane %v1649, %v1661
    %v1663 = vlaneseq
    %v1664 = vshrl.u32 %v1663, 7
    %v1665 = vsub.s32 3, %v1664
    %v1666 = vrot.slane %v1649, %v1665
    %v1671 = vmul.f32 %v1646, %v1654
    %v1672 = vmul.f32 %v1645, %v1658
    %v1673 = vmul.f32 %v1644, %v1662
    %v1674 = vmul.f32 %v1647, %v1666
    %s1675 = scalar_lea.vmem %s2, 28
    %v1676 = vld [vmem:[%s1675] sm:$0xf]
    %v1678 = vsel %vm345, %v1676, 0
    %v1681 = vsel %vm210, %v1671, 0
    %v1684 = vsel %vm210, %v1672, 0
    %v1687 = vsel %vm210, %v1673, 0
    %v1690 = vsel %vm210, %v1674, 0
    %1692 = vmatprep.subr.mxu0 %v1684
    %1693 = vmatpush1.msra.mxu0 %v1681
    %1694 = vmatprep.subr.mxu0 0.0
    %1695 = vmatpush1.msra.mxu0 0.0
    %1696 = vmatprep.subr.mxu0 0.0
    %1697 = vmatpush1.msra.mxu0 0.0
    %1698 = vmatprep.subr.mxu0 0.0
    %1699 = vmatpush1.msra.mxu0 0.0
    %1700 = vmatprep.subr.mxu0 0.0
    %1701 = vmatpush1.msra.mxu0 0.0
    %1702 = vmatprep.subr.mxu0 0.0
    %1703 = vmatpush1.msra.mxu0 0.0
    %1704 = vmatprep.subr.mxu0 0.0
    %1705 = vmatpush1.msra.mxu0 0.0
    %1706 = vmatprep.subr.mxu0 0.0
    %1707 = vmatpush1.msra.mxu0 0.0
    %1708 = vmatprep.subr.mxu0 0.0
    %1709 = vmatpush1.msra.mxu0 0.0
    %1710 = vmatprep.subr.mxu0 0.0
    %1711 = vmatpush1.msra.mxu0 0.0
    %1712 = vmatprep.subr.mxu0 0.0
    %1713 = vmatpush1.msra.mxu0 0.0
    %1714 = vmatprep.subr.mxu0 0.0
    %1715 = vmatpush1.msra.mxu0 0.0
    %1716 = vmatprep.subr.mxu0 0.0
    %1717 = vmatpush1.msra.mxu0 0.0
    %1718 = vmatprep.subr.mxu0 0.0
    %1719 = vmatpush1.msra.mxu0 0.0
    %1720 = vmatprep.subr.mxu0 0.0
    %1721 = vmatpush1.msra.mxu0 0.0
    %1722 = vmatprep.subr.mxu0 0.0
    %1723 = vmatpush1.msra.mxu0 0.0
    %1724 = vmatprep.subr.mxu0 0.0
    %1725 = vmatpush1.msra.mxu0 0.0
    %1726 = vmatprep.subr.mxu0 0.0
    %1727 = vmatpush1.msra.mxu0 0.0
    %1728 = vmatprep.subr.mxu0 0.0
    %1729 = vmatpush1.msra.mxu0 0.0
    %1730 = vmatprep.subr.mxu0 0.0
    %1731 = vmatpush1.msra.mxu0 0.0
    %1732 = vmatprep.subr.mxu0 0.0
    %1733 = vmatpush1.msra.mxu0 0.0
    %1734 = vmatprep.subr.mxu0 0.0
    %1735 = vmatpush1.msra.mxu0 0.0
    %1736 = vmatprep.subr.mxu0 0.0
    %1737 = vmatpush1.msra.mxu0 0.0
    %1738 = vmatprep.subr.mxu0 0.0
    %1739 = vmatpush1.msra.mxu0 0.0
    %1740 = vmatprep.subr.mxu0 0.0
    %1741 = vmatpush1.msra.mxu0 0.0
    %1742 = vmatprep.subr.mxu0 0.0
    %1743 = vmatpush1.msra.mxu0 0.0
    %1744 = vmatprep.subr.mxu0 0.0
    %1745 = vmatpush1.msra.mxu0 0.0
    %1746 = vmatprep.subr.mxu0 0.0
    %1747 = vmatpush1.msra.mxu0 0.0
    %1748 = vmatprep.subr.mxu0 0.0
    %1749 = vmatpush1.msra.mxu0 0.0
    %1750 = vmatprep.subr.mxu0 0.0
    %1751 = vmatpush1.msra.mxu0 0.0
    %1752 = vmatprep.subr.mxu0 0.0
    %1753 = vmatpush1.msra.mxu0 0.0
    %1754 = vmatprep.subr.mxu0 0.0
    %1755 = vmatpush1.msra.mxu0 0.0
    %1756 = vmatprep.mubr.f32.mxu0 0.0
    %1757 = vmatmul.mubr.f32.gmra.mrb[0].mxu0 %v1678
    %v1758 = vpop.f32.mrb[0].mxu0
    %v1759 = vadd.f32 0.0, %v1758
    %v1760 = vpop.f32.mrb[0].mxu0
    %v1761 = vadd.f32 0.0, %v1760
    %1762 = vdwg.mxu0
    %1763 = vmatprep.subr.mxu0 %v1690
    %1764 = vmatpush1.msra.mxu0 %v1687
    %1765 = vmatprep.subr.mxu0 0.0
    %1766 = vmatpush1.msra.mxu0 0.0
    %1767 = vmatprep.subr.mxu0 0.0
    %1768 = vmatpush1.msra.mxu0 0.0
    %1769 = vmatprep.subr.mxu0 0.0
    %1770 = vmatpush1.msra.mxu0 0.0
    %1771 = vmatprep.subr.mxu0 0.0
    %1772 = vmatpush1.msra.mxu0 0.0
    %1773 = vmatprep.subr.mxu0 0.0
    %1774 = vmatpush1.msra.mxu0 0.0
    %1775 = vmatprep.subr.mxu0 0.0
    %1776 = vmatpush1.msra.mxu0 0.0
    %1777 = vmatprep.subr.mxu0 0.0
    %1778 = vmatpush1.msra.mxu0 0.0
    %1779 = vmatprep.subr.mxu0 0.0
    %1780 = vmatpush1.msra.mxu0 0.0
    %1781 = vmatprep.subr.mxu0 0.0
    %1782 = vmatpush1.msra.mxu0 0.0
    %1783 = vmatprep.subr.mxu0 0.0
    %1784 = vmatpush1.msra.mxu0 0.0
    %1785 = vmatprep.subr.mxu0 0.0
    %1786 = vmatpush1.msra.mxu0 0.0
    %1787 = vmatprep.subr.mxu0 0.0
    %1788 = vmatpush1.msra.mxu0 0.0
    %1789 = vmatprep.subr.mxu0 0.0
    %1790 = vmatpush1.msra.mxu0 0.0
    %1791 = vmatprep.subr.mxu0 0.0
    %1792 = vmatpush1.msra.mxu0 0.0
    %1793 = vmatprep.subr.mxu0 0.0
    %1794 = vmatpush1.msra.mxu0 0.0
    %1795 = vmatprep.subr.mxu0 0.0
    %1796 = vmatpush1.msra.mxu0 0.0
    %1797 = vmatprep.subr.mxu0 0.0
    %1798 = vmatpush1.msra.mxu0 0.0
    %1799 = vmatprep.subr.mxu0 0.0
    %1800 = vmatpush1.msra.mxu0 0.0
    %1801 = vmatprep.subr.mxu0 0.0
    %1802 = vmatpush1.msra.mxu0 0.0
    %1803 = vmatprep.subr.mxu0 0.0
    %1804 = vmatpush1.msra.mxu0 0.0
    %1805 = vmatprep.subr.mxu0 0.0
    %1806 = vmatpush1.msra.mxu0 0.0
    %1807 = vmatprep.subr.mxu0 0.0
    %1808 = vmatpush1.msra.mxu0 0.0
    %1809 = vmatprep.subr.mxu0 0.0
    %1810 = vmatpush1.msra.mxu0 0.0
    %1811 = vmatprep.subr.mxu0 0.0
    %1812 = vmatpush1.msra.mxu0 0.0
    %1813 = vmatprep.subr.mxu0 0.0
    %1814 = vmatpush1.msra.mxu0 0.0
    %1815 = vmatprep.subr.mxu0 0.0
    %1816 = vmatpush1.msra.mxu0 0.0
    %1817 = vmatprep.subr.mxu0 0.0
    %1818 = vmatpush1.msra.mxu0 0.0
    %1819 = vmatprep.subr.mxu0 0.0
    %1820 = vmatpush1.msra.mxu0 0.0
    %1821 = vmatprep.subr.mxu0 0.0
    %1822 = vmatpush1.msra.mxu0 0.0
    %1823 = vmatprep.subr.mxu0 0.0
    %1824 = vmatpush1.msra.mxu0 0.0
    %1825 = vmatprep.subr.mxu0 0.0
    %1826 = vmatpush1.msra.mxu0 0.0
    %1827 = vmatprep.mubr.f32.mxu0 0.0
    %1828 = vmatmul.mubr.f32.gmra.mrb[0].mxu0 %v1678
    %v1829 = vpop.f32.mrb[0].mxu0
    %v1830 = vadd.f32 0.0, %v1829
    %v1831 = vpop.f32.mrb[0].mxu0
    %v1832 = vadd.f32 0.0, %v1831
    %1833 = vdwg.mxu0
    %v1834 = vadd.f32 %v1631, %v1759
    %v1835 = vadd.f32 %v1632, %v1761
    %v1836 = vadd.f32 %v1633, %v1830
    %v1837 = vadd.f32 %v1634, %v1832
    %1838 = vrot.lane.b32.xlu0 %v257, 111
    %v1839 = vpop.permute.xlu0 %1838
    %1840 = vrot.lane.b32.xlu0 %v258, 111
    %v1841 = vpop.permute.xlu0 %1840
    %1842 = vrot.lane.b32.xlu0 %v259, 111
    %v1843 = vpop.permute.xlu0 %1842
    %1844 = vrot.lane.b32.xlu0 %v260, 111
    %v1845 = vpop.permute.xlu0 %1844
    %vm1846 = vcmp.lt.s32.totalorder %v270, 111
    %v1847 = vsel %vm1846, %v1843, %v1845
    %v1848 = vsel %vm1846, %v1841, %v1843
    %v1849 = vsel %vm1846, %v1839, %v1841
    %v1850 = vsel %vm1846, %v1845, %v1839
    %s1851 = scalar_lea.vmem [#allocation2], 32
    %v1852 = vld [vmem:[%s1851] ss:$8 sm:$0xf]
    %v1854 = vlaneseq
    %v1855 = vshrl.u32 %v1854, 7
    %v1856 = vsub.s32 0, %v1855
    %v1857 = vrot.slane %v1852, %v1856
    %v1858 = vlaneseq
    %v1859 = vshrl.u32 %v1858, 7
    %v1860 = vsub.s32 1, %v1859
    %v1861 = vrot.slane %v1852, %v1860
    %v1862 = vlaneseq
    %v1863 = vshrl.u32 %v1862, 7
    %v1864 = vsub.s32 2, %v1863
    %v1865 = vrot.slane %v1852, %v1864
    %v1866 = vlaneseq
    %v1867 = vshrl.u32 %v1866, 7
    %v1868 = vsub.s32 3, %v1867
    %v1869 = vrot.slane %v1852, %v1868
    %v1874 = vmul.f32 %v1849, %v1857
    %v1875 = vmul.f32 %v1848, %v1861
    %v1876 = vmul.f32 %v1847, %v1865
    %v1877 = vmul.f32 %v1850, %v1869
    %s1878 = scalar_lea.vmem %s2, 32
    %v1879 = vld [vmem:[%s1878] sm:$0xf]
    %v1881 = vsel %vm345, %v1879, 0
    %v1884 = vsel %vm210, %v1874, 0
    %v1887 = vsel %vm210, %v1875, 0
    %v1890 = vsel %vm210, %v1876, 0
    %v1893 = vsel %vm210, %v1877, 0
    %1895 = vmatprep.subr.mxu0 %v1887
    %1896 = vmatpush1.msra.mxu0 %v1884
    %1897 = vmatprep.subr.mxu0 0.0
    %1898 = vmatpush1.msra.mxu0 0.0
    %1899 = vmatprep.subr.mxu0 0.0
    %1900 = vmatpush1.msra.mxu0 0.0
    %1901 = vmatprep.subr.mxu0 0.0
    %1902 = vmatpush1.msra.mxu0 0.0
    %1903 = vmatprep.subr.mxu0 0.0
    %1904 = vmatpush1.msra.mxu0 0.0
    %1905 = vmatprep.subr.mxu0 0.0
    %1906 = vmatpush1.msra.mxu0 0.0
    %1907 = vmatprep.subr.mxu0 0.0
    %1908 = vmatpush1.msra.mxu0 0.0
    %1909 = vmatprep.subr.mxu0 0.0
    %1910 = vmatpush1.msra.mxu0 0.0
    %1911 = vmatprep.subr.mxu0 0.0
    %1912 = vmatpush1.msra.mxu0 0.0
    %1913 = vmatprep.subr.mxu0 0.0
    %1914 = vmatpush1.msra.mxu0 0.0
    %1915 = vmatprep.subr.mxu0 0.0
    %1916 = vmatpush1.msra.mxu0 0.0
    %1917 = vmatprep.subr.mxu0 0.0
    %1918 = vmatpush1.msra.mxu0 0.0
    %1919 = vmatprep.subr.mxu0 0.0
    %1920 = vmatpush1.msra.mxu0 0.0
    %1921 = vmatprep.subr.mxu0 0.0
    %1922 = vmatpush1.msra.mxu0 0.0
    %1923 = vmatprep.subr.mxu0 0.0
    %1924 = vmatpush1.msra.mxu0 0.0
    %1925 = vmatprep.subr.mxu0 0.0
    %1926 = vmatpush1.msra.mxu0 0.0
    %1927 = vmatprep.subr.mxu0 0.0
    %1928 = vmatpush1.msra.mxu0 0.0
    %1929 = vmatprep.subr.mxu0 0.0
    %1930 = vmatpush1.msra.mxu0 0.0
    %1931 = vmatprep.subr.mxu0 0.0
    %1932 = vmatpush1.msra.mxu0 0.0
    %1933 = vmatprep.subr.mxu0 0.0
    %1934 = vmatpush1.msra.mxu0 0.0
    %1935 = vmatprep.subr.mxu0 0.0
    %1936 = vmatpush1.msra.mxu0 0.0
    %1937 = vmatprep.subr.mxu0 0.0
    %1938 = vmatpush1.msra.mxu0 0.0
    %1939 = vmatprep.subr.mxu0 0.0
    %1940 = vmatpush1.msra.mxu0 0.0
    %1941 = vmatprep.subr.mxu0 0.0
    %1942 = vmatpush1.msra.mxu0 0.0
    %1943 = vmatprep.subr.mxu0 0.0
    %1944 = vmatpush1.msra.mxu0 0.0
    %1945 = vmatprep.subr.mxu0 0.0
    %1946 = vmatpush1.msra.mxu0 0.0
    %1947 = vmatprep.subr.mxu0 0.0
    %1948 = vmatpush1.msra.mxu0 0.0
    %1949 = vmatprep.subr.mxu0 0.0
    %1950 = vmatpush1.msra.mxu0 0.0
    %1951 = vmatprep.subr.mxu0 0.0
    %1952 = vmatpush1.msra.mxu0 0.0
    %1953 = vmatprep.subr.mxu0 0.0
    %1954 = vmatpush1.msra.mxu0 0.0
    %1955 = vmatprep.subr.mxu0 0.0
    %1956 = vmatpush1.msra.mxu0 0.0
    %1957 = vmatprep.subr.mxu0 0.0
    %1958 = vmatpush1.msra.mxu0 0.0
    %1959 = vmatprep.mubr.f32.mxu0 0.0
    %1960 = vmatmul.mubr.f32.gmra.mrb[0].mxu0 %v1881
    %v1961 = vpop.f32.mrb[0].mxu0
    %v1962 = vadd.f32 0.0, %v1961
    %v1963 = vpop.f32.mrb[0].mxu0
    %v1964 = vadd.f32 0.0, %v1963
    %1965 = vdwg.mxu0
    %1966 = vmatprep.subr.mxu0 %v1893
    %1967 = vmatpush1.msra.mxu0 %v1890
    %1968 = vmatprep.subr.mxu0 0.0
    %1969 = vmatpush1.msra.mxu0 0.0
    %1970 = vmatprep.subr.mxu0 0.0
    %1971 = vmatpush1.msra.mxu0 0.0
    %1972 = vmatprep.subr.mxu0 0.0
    %1973 = vmatpush1.msra.mxu0 0.0
    %1974 = vmatprep.subr.mxu0 0.0
    %1975 = vmatpush1.msra.mxu0 0.0
    %1976 = vmatprep.subr.mxu0 0.0
    %1977 = vmatpush1.msra.mxu0 0.0
    %1978 = vmatprep.subr.mxu0 0.0
    %1979 = vmatpush1.msra.mxu0 0.0
    %1980 = vmatprep.subr.mxu0 0.0
    %1981 = vmatpush1.msra.mxu0 0.0
    %1982 = vmatprep.subr.mxu0 0.0
    %1983 = vmatpush1.msra.mxu0 0.0
    %1984 = vmatprep.subr.mxu0 0.0
    %1985 = vmatpush1.msra.mxu0 0.0
    %1986 = vmatprep.subr.mxu0 0.0
    %1987 = vmatpush1.msra.mxu0 0.0
    %1988 = vmatprep.subr.mxu0 0.0
    %1989 = vmatpush1.msra.mxu0 0.0
    %1990 = vmatprep.subr.mxu0 0.0
    %1991 = vmatpush1.msra.mxu0 0.0
    %1992 = vmatprep.subr.mxu0 0.0
    %1993 = vmatpush1.msra.mxu0 0.0
    %1994 = vmatprep.subr.mxu0 0.0
    %1995 = vmatpush1.msra.mxu0 0.0
    %1996 = vmatprep.subr.mxu0 0.0
    %1997 = vmatpush1.msra.mxu0 0.0
    %1998 = vmatprep.subr.mxu0 0.0
    %1999 = vmatpush1.msra.mxu0 0.0
    %2000 = vmatprep.subr.mxu0 0.0
    %2001 = vmatpush1.msra.mxu0 0.0
    %2002 = vmatprep.subr.mxu0 0.0
    %2003 = vmatpush1.msra.mxu0 0.0
    %2004 = vmatprep.subr.mxu0 0.0
    %2005 = vmatpush1.msra.mxu0 0.0
    %2006 = vmatprep.subr.mxu0 0.0
    %2007 = vmatpush1.msra.mxu0 0.0
    %2008 = vmatprep.subr.mxu0 0.0
    %2009 = vmatpush1.msra.mxu0 0.0
    %2010 = vmatprep.subr.mxu0 0.0
    %2011 = vmatpush1.msra.mxu0 0.0
    %2012 = vmatprep.subr.mxu0 0.0
    %2013 = vmatpush1.msra.mxu0 0.0
    %2014 = vmatprep.subr.mxu0 0.0
    %2015 = vmatpush1.msra.mxu0 0.0
    %2016 = vmatprep.subr.mxu0 0.0
    %2017 = vmatpush1.msra.mxu0 0.0
    %2018 = vmatprep.subr.mxu0 0.0
    %2019 = vmatpush1.msra.mxu0 0.0
    %2020 = vmatprep.subr.mxu0 0.0
    %2021 = vmatpush1.msra.mxu0 0.0
    %2022 = vmatprep.subr.mxu0 0.0
    %2023 = vmatpush1.msra.mxu0 0.0
    %2024 = vmatprep.subr.mxu0 0.0
    %2025 = vmatpush1.msra.mxu0 0.0
    %2026 = vmatprep.subr.mxu0 0.0
    %2027 = vmatpush1.msra.mxu0 0.0
    %2028 = vmatprep.subr.mxu0 0.0
    %2029 = vmatpush1.msra.mxu0 0.0
    %2030 = vmatprep.mubr.f32.mxu0 0.0
    %2031 = vmatmul.mubr.f32.gmra.mrb[0].mxu0 %v1881
    %v2032 = vpop.f32.mrb[0].mxu0
    %v2033 = vadd.f32 0.0, %v2032
    %v2034 = vpop.f32.mrb[0].mxu0
    %v2035 = vadd.f32 0.0, %v2034
    %2036 = vdwg.mxu0
    %v2037 = vadd.f32 %v1834, %v1962
    %v2038 = vadd.f32 %v1835, %v1964
    %v2039 = vadd.f32 %v1836, %v2033
    %v2040 = vadd.f32 %v1837, %v2035
    %v2041 = vmul.f32 %v2037, %v2037
    %v2042 = vmul.f32 %v2038, %v2038
    %v2043 = vmul.f32 %v2039, %v2039
    %v2044 = vmul.f32 %v2040, %v2040
    %v2049 = vrot.slane %v2041, 4
    %v2050 = vrot.slane %v2042, 4
    %v2051 = vrot.slane %v2043, 4
    %v2052 = vrot.slane %v2044, 4
    %v2057 = vsel %vm210, %v2037, %v2049
    %v2058 = vsel %vm210, %v2038, %v2050
    %v2059 = vsel %vm210, %v2039, %v2051
    %v2060 = vsel %vm210, %v2040, %v2052
    %v2061 = vadd.f32 %v2057, %v2058
    %v2062 = vadd.f32 %v2061, %v2059
    %v2063 = vadd.f32 %v2062, %v2060
    %2064 = vadd.xlane.f32.xlu0 %v2063
    %v2065 = vpop.xlane.xlu0 %2064
    %v2066 = vmul.f32 %v2065, 0.001953125
    %v2067 = vmul.f32 %v2066, %v2066
    %v2069 = vrot.slane %v2067, 4
    %v2071 = vsub.f32 %v2066, %v2069
    %v2072 = vmax.f32 %v2071, 0.0
    %v2073 = vadd.f32 %v2072, 1e-05
    %v2074 = vrsqrt.pop %v2073
    %v2076 = vrot.slane %v2074, 4
    %2077 = vrot.lane.b32.xlu0 %v2076, 2
    %v2078 = vpop.permute.xlu0 %2077
    %v2080 = vmul.f32 %v193, %v2078
    %v2081 = vmul.f32 %v2066, %v2080
    %2083 = vrot.lane.b32.xlu0 %v2081, 1
    %v2084 = vpop.permute.xlu0 %2083
    %v2086 = vsub.f32 %v193, %v2084
    %2088 = vset.pattern.permute.xlu0 2
    %2089 = vperm.xlu0 %2088, %v2080
    %v2090 = vpop.permute.xlu0 %2089
    %v2092 = vmul.f32 %v2037, %v2090
    %v2093 = vmul.f32 %v2038, %v2090
    %v2094 = vmul.f32 %v2039, %v2090
    %v2095 = vmul.f32 %v2040, %v2090
    %2097 = vset.pattern.permute.xlu0 3
    %2098 = vperm.xlu0 %2097, %v2086
    %v2099 = vpop.permute.xlu0 %2098
    %v2101 = vadd.f32 %v2092, %v2099
    %v2102 = vadd.f32 %v2093, %v2099
    %v2103 = vadd.f32 %v2094, %v2099
    %v2104 = vadd.f32 %v2095, %v2099
    %v2105 = vmax.f32 %v2101, 0.0
    %v2106 = vmax.f32 %v2102, 0.0
    %v2107 = vmax.f32 %v2103, 0.0
    %v2108 = vmax.f32 %v2104, 0.0
    %v2109 = vld [vmem:[%s3] sm:$0xff]
    %v2110 = vld [vmem:[%s3 + $0x8] sm:$0xff]
    %v2112 = vsel %vm345, %v2109, 0
    %v2115 = vsel %vm345, %v2110, 0
    %v2118 = vsel %vm210, %v2105, 0
    %v2121 = vsel %vm210, %v2106, 0
    %v2124 = vsel %vm210, %v2107, 0
    %v2127 = vsel %vm210, %v2108, 0
    %2129 = vmatprep.subr.mxu0 %v2121
    %2130 = vmatpush1.msra.mxu0 %v2118
    %2131 = vmatprep.subr.mxu0 0.0
    %2132 = vmatpush1.msra.mxu0 0.0
    %2133 = vmatprep.subr.mxu0 0.0
    %2134 = vmatpush1.msra.mxu0 0.0
    %2135 = vmatprep.subr.mxu0 0.0
    %2136 = vmatpush1.msra.mxu0 0.0
    %2137 = vmatprep.subr.mxu0 0.0
    %2138 = vmatpush1.msra.mxu0 0.0
    %2139 = vmatprep.subr.mxu0 0.0
    %2140 = vmatpush1.msra.mxu0 0.0
    %2141 = vmatprep.subr.mxu0 0.0
    %2142 = vmatpush1.msra.mxu0 0.0
    %2143 = vmatprep.subr.mxu0 0.0
    %2144 = vmatpush1.msra.mxu0 0.0
    %2145 = vmatprep.subr.mxu0 0.0
    %2146 = vmatpush1.msra.mxu0 0.0
    %2147 = vmatprep.subr.mxu0 0.0
    %2148 = vmatpush1.msra.mxu0 0.0
    %2149 = vmatprep.subr.mxu0 0.0
    %2150 = vmatpush1.msra.mxu0 0.0
    %2151 = vmatprep.subr.mxu0 0.0
    %2152 = vmatpush1.msra.mxu0 0.0
    %2153 = vmatprep.subr.mxu0 0.0
    %2154 = vmatpush1.msra.mxu0 0.0
    %2155 = vmatprep.subr.mxu0 0.0
    %2156 = vmatpush1.msra.mxu0 0.0
    %2157 = vmatprep.subr.mxu0 0.0
    %2158 = vmatpush1.msra.mxu0 0.0
    %2159 = vmatprep.subr.mxu0 0.0
    %2160 = vmatpush1.msra.mxu0 0.0
    %2161 = vmatprep.subr.mxu0 0.0
    %2162 = vmatpush1.msra.mxu0 0.0
    %2163 = vmatprep.subr.mxu0 0.0
    %2164 = vmatpush1.msra.mxu0 0.0
    %2165 = vmatprep.subr.mxu0 0.0
    %2166 = vmatpush1.msra.mxu0 0.0
    %2167 = vmatprep.subr.mxu0 0.0
    %2168 = vmatpush1.msra.mxu0 0.0
    %2169 = vmatprep.subr.mxu0 0.0
    %2170 = vmatpush1.msra.mxu0 0.0
    %2171 = vmatprep.subr.mxu0 0.0
    %2172 = vmatpush1.msra.mxu0 0.0
    %2173 = vmatprep.subr.mxu0 0.0
    %2174 = vmatpush1.msra.mxu0 0.0
    %2175 = vmatprep.subr.mxu0 0.0
    %2176 = vmatpush1.msra.mxu0 0.0
    %2177 = vmatprep.subr.mxu0 0.0
    %2178 = vmatpush1.msra.mxu0 0.0
    %2179 = vmatprep.subr.mxu0 0.0
    %2180 = vmatpush1.msra.mxu0 0.0
    %2181 = vmatprep.subr.mxu0 0.0
    %2182 = vmatpush1.msra.mxu0 0.0
    %2183 = vmatprep.subr.mxu0 0.0
    %2184 = vmatpush1.msra.mxu0 0.0
    %2185 = vmatprep.subr.mxu0 0.0
    %2186 = vmatpush1.msra.mxu0 0.0
    %2187 = vmatprep.subr.mxu0 0.0
    %2188 = vmatpush1.msra.mxu0 0.0
    %2189 = vmatprep.subr.mxu0 0.0
    %2190 = vmatpush1.msra.mxu0 0.0
    %2191 = vmatprep.subr.mxu0 0.0
    %2192 = vmatpush1.msra.mxu0 0.0
    %2193 = vmatprep.mubr.f32.mxu0 0.0
    %2194 = vmatmul.mubr.f32.gmra.mrb[0].mxu0 %v2112
    %v2195 = vpop.f32.mrb[0].mxu0
    %v2196 = vadd.f32 0.0, %v2195
    %v2197 = vpop.f32.mrb[0].mxu0
    %v2198 = vadd.f32 0.0, %v2197
    %2199 = vmatprep.mubr.f32.mxu0 0.0
    %2200 = vmatmul.mubr.f32.gmra.mrb[0].mxu0 %v2115
    %v2201 = vpop.f32.mrb[0].mxu0
    %v2202 = vadd.f32 0.0, %v2201
    %v2203 = vpop.f32.mrb[0].mxu0
    %v2204 = vadd.f32 0.0, %v2203
    %2205 = vdwg.mxu0
    %2206 = vmatprep.subr.mxu0 %v2127
    %2207 = vmatpush1.msra.mxu0 %v2124
    %2208 = vmatprep.subr.mxu0 0.0
    %2209 = vmatpush1.msra.mxu0 0.0
    %2210 = vmatprep.subr.mxu0 0.0
    %2211 = vmatpush1.msra.mxu0 0.0
    %2212 = vmatprep.subr.mxu0 0.0
    %2213 = vmatpush1.msra.mxu0 0.0
    %2214 = vmatprep.subr.mxu0 0.0
    %2215 = vmatpush1.msra.mxu0 0.0
    %2216 = vmatprep.subr.mxu0 0.0
    %2217 = vmatpush1.msra.mxu0 0.0
    %2218 = vmatprep.subr.mxu0 0.0
    %2219 = vmatpush1.msra.mxu0 0.0
    %2220 = vmatprep.subr.mxu0 0.0
    %2221 = vmatpush1.msra.mxu0 0.0
    %2222 = vmatprep.subr.mxu0 0.0
    %2223 = vmatpush1.msra.mxu0 0.0
    %2224 = vmatprep.subr.mxu0 0.0
    %2225 = vmatpush1.msra.mxu0 0.0
    %2226 = vmatprep.subr.mxu0 0.0
    %2227 = vmatpush1.msra.mxu0 0.0
    %2228 = vmatprep.subr.mxu0 0.0
    %2229 = vmatpush1.msra.mxu0 0.0
    %2230 = vmatprep.subr.mxu0 0.0
    %2231 = vmatpush1.msra.mxu0 0.0
    %2232 = vmatprep.subr.mxu0 0.0
    %2233 = vmatpush1.msra.mxu0 0.0
    %2234 = vmatprep.subr.mxu0 0.0
    %2235 = vmatpush1.msra.mxu0 0.0
    %2236 = vmatprep.subr.mxu0 0.0
    %2237 = vmatpush1.msra.mxu0 0.0
    %2238 = vmatprep.subr.mxu0 0.0
    %2239 = vmatpush1.msra.mxu0 0.0
    %2240 = vmatprep.subr.mxu0 0.0
    %2241 = vmatpush1.msra.mxu0 0.0
    %2242 = vmatprep.subr.mxu0 0.0
    %2243 = vmatpush1.msra.mxu0 0.0
    %2244 = vmatprep.subr.mxu0 0.0
    %2245 = vmatpush1.msra.mxu0 0.0
    %2246 = vmatprep.subr.mxu0 0.0
    %2247 = vmatpush1.msra.mxu0 0.0
    %2248 = vmatprep.subr.mxu0 0.0
    %2249 = vmatpush1.msra.mxu0 0.0
    %2250 = vmatprep.subr.mxu0 0.0
    %2251 = vmatpush1.msra.mxu0 0.0
    %2252 = vmatprep.subr.mxu0 0.0
    %2253 = vmatpush1.msra.mxu0 0.0
    %2254 = vmatprep.subr.mxu0 0.0
    %2255 = vmatpush1.msra.mxu0 0.0
    %2256 = vmatprep.subr.mxu0 0.0
    %2257 = vmatpush1.msra.mxu0 0.0
    %2258 = vmatprep.subr.mxu0 0.0
    %2259 = vmatpush1.msra.mxu0 0.0
    %2260 = vmatprep.subr.mxu0 0.0
    %2261 = vmatpush1.msra.mxu0 0.0
    %2262 = vmatprep.subr.mxu0 0.0
    %2263 = vmatpush1.msra.mxu0 0.0
    %2264 = vmatprep.subr.mxu0 0.0
    %2265 = vmatpush1.msra.mxu0 0.0
    %2266 = vmatprep.subr.mxu0 0.0
    %2267 = vmatpush1.msra.mxu0 0.0
    %2268 = vmatprep.subr.mxu0 0.0
    %2269 = vmatpush1.msra.mxu0 0.0
    %2270 = vmatprep.mubr.f32.mxu0 0.0
    %2271 = vmatmul.mubr.f32.gmra.mrb[0].mxu0 %v2112
    %v2272 = vpop.f32.mrb[0].mxu0
    %v2273 = vadd.f32 0.0, %v2272
    %v2274 = vpop.f32.mrb[0].mxu0
    %v2275 = vadd.f32 0.0, %v2274
    %2276 = vmatprep.mubr.f32.mxu0 0.0
    %2277 = vmatmul.mubr.f32.gmra.mrb[0].mxu0 %v2115
    %v2278 = vpop.f32.mrb[0].mxu0
    %v2279 = vadd.f32 0.0, %v2278
    %v2280 = vpop.f32.mrb[0].mxu0
    %v2281 = vadd.f32 0.0, %v2280
    %2282 = vdwg.mxu0
    %v2283 = vld [vmem:[%s4] sm:$0xff]
    %v2284 = vld [vmem:[%s4 + $0x8] sm:$0xff]
    %v2285 = vmul.f32 %v2196, %v2196
    %v2286 = vmul.f32 %v2198, %v2198
    %v2287 = vmul.f32 %v2273, %v2273
    %v2288 = vmul.f32 %v2275, %v2275
    %v2289 = vmul.f32 %v2202, %v2202
    %v2290 = vmul.f32 %v2204, %v2204
    %v2291 = vmul.f32 %v2279, %v2279
    %v2292 = vmul.f32 %v2281, %v2281
    %v2293 = vadd.f32 %v2196, %v2198
    %v2294 = vadd.f32 %v2293, %v2273
    %v2295 = vadd.f32 %v2294, %v2275
    %2296 = vadd.xlane.f32.xlu0 %v2295
    %v2297 = vpop.xlane.xlu0 %2296
    %v2298 = vadd.f32 %v2202, %v2204
    %v2299 = vadd.f32 %v2298, %v2279
    %v2300 = vadd.f32 %v2299, %v2281
    %2301 = vadd.xlane.f32.xlu0 %v2300
    %v2302 = vpop.xlane.xlu0 %2301
    %v2303 = vadd.f32 %v2285, %v2286
    %v2304 = vadd.f32 %v2303, %v2287
    %v2305 = vadd.f32 %v2304, %v2288
    %2306 = vadd.xlane.f32.xlu0 %v2305
    %v2307 = vpop.xlane.xlu0 %2306
    %v2308 = vadd.f32 %v2289, %v2290
    %v2309 = vadd.f32 %v2308, %v2291
    %v2310 = vadd.f32 %v2309, %v2292
    %2311 = vadd.xlane.f32.xlu0 %v2310
    %v2312 = vpop.xlane.xlu0 %2311
    %v2313 = vmul.f32 %v2297, 0.001953125
    %v2314 = vmul.f32 %v2302, 0.001953125
    %v2315 = vmul.f32 %v2307, 0.001953125
    %v2316 = vmul.f32 %v2312, 0.001953125
    %v2317 = vmul.f32 %v2313, %v2313
    %v2318 = vmul.f32 %v2314, %v2314
    %v2319 = vsub.f32 %v2315, %v2317
    %v2320 = vsub.f32 %v2316, %v2318
    %v2321 = vmax.f32 %v2319, 0.0
    %v2322 = vmax.f32 %v2320, 0.0
    %v2323 = vadd.f32 %v2321, 1e-05
    %v2324 = vadd.f32 %v2322, 1e-05
    %v2325 = vrsqrt.pop %v2323
    %v2326 = vrsqrt.pop %v2324
    %v2327 = vmul.f32 %v2283, %v2325
    %v2328 = vmul.f32 %v2284, %v2326
    %v2329 = vmul.f32 %v2313, %v2327
    %v2330 = vmul.f32 %v2314, %v2328
    %2333 = vrot.lane.b32.xlu0 %v2329, 1
    %v2334 = vpop.permute.xlu0 %2333
    %2335 = vrot.lane.b32.xlu0 %v2330, 1
    %v2336 = vpop.permute.xlu0 %2335
    %v2339 = vsub.f32 %v2283, %v2334
    %v2340 = vsub.f32 %v2284, %v2336
    %2342 = vset.pattern.permute.xlu0 4
    %2343 = vperm.xlu0 %2342, %v2327
    %v2344 = vpop.permute.xlu0 %2343
    %2347 = vset.pattern.permute.xlu0 4
    %2348 = vperm.xlu0 %2347, %v2328
    %v2349 = vpop.permute.xlu0 %2348
    %v2351 = vmul.f32 %v2196, %v2344
    %v2352 = vmul.f32 %v2198, %v2344
    %v2353 = vmul.f32 %v2273, %v2344
    %v2354 = vmul.f32 %v2275, %v2344
    %v2355 = vmul.f32 %v2202, %v2349
    %v2356 = vmul.f32 %v2204, %v2349
    %v2357 = vmul.f32 %v2279, %v2349
    %v2358 = vmul.f32 %v2281, %v2349
    %2360 = vset.pattern.permute.xlu0 5
    %2361 = vperm.xlu0 %2360, %v2339
    %v2362 = vpop.permute.xlu0 %2361
    %2365 = vset.pattern.permute.xlu0 5
    %2366 = vperm.xlu0 %2365, %v2340
    %v2367 = vpop.permute.xlu0 %2366
    %v2369 = vadd.f32 %v2351, %v2362
    %v2370 = vadd.f32 %v2352, %v2362
    %v2371 = vadd.f32 %v2353, %v2362
    %v2372 = vadd.f32 %v2354, %v2362
    %v2373 = vadd.f32 %v2355, %v2367
    %v2374 = vadd.f32 %v2356, %v2367
    %v2375 = vadd.f32 %v2357, %v2367
    %v2376 = vadd.f32 %v2358, %v2367
    %v2377 = vadd.f32 %v2369, %v39
    %v2378 = vadd.f32 %v2370, %v40
    %v2379 = vadd.f32 %v2371, %v41
    %v2380 = vadd.f32 %v2372, %v42
    %v2381 = vadd.f32 %v2373, %v43
    %v2382 = vadd.f32 %v2374, %v44
    %v2383 = vadd.f32 %v2375, %v45
    %v2384 = vadd.f32 %v2376, %v46
    %v2385 = vmax.f32 %v2377, 0.0
    %v2386 = vmax.f32 %v2378, 0.0
    %v2387 = vmax.f32 %v2379, 0.0
    %v2388 = vmax.f32 %v2380, 0.0
    %v2389 = vmax.f32 %v2381, 0.0
    %v2390 = vmax.f32 %v2382, 0.0
    %v2391 = vmax.f32 %v2383, 0.0
    %v2392 = vmax.f32 %v2384, 0.0
    %2393 = vst [vmem:[#allocation5] sm:$0xff] %v2385
    %2394 = vst [vmem:[#allocation5 + $0x8] sm:$0xff] %v2386
    %2395 = vst [vmem:[#allocation5 + $0x10] sm:$0xff] %v2387
    %2396 = vst [vmem:[#allocation5 + $0x18] sm:$0xff] %v2388
    %2397 = vst [vmem:[#allocation5 + $0x20] sm:$0xff] %v2389
    %2398 = vst [vmem:[#allocation5 + $0x28] sm:$0xff] %v2390
    %2399 = vst [vmem:[#allocation5 + $0x30] sm:$0xff] %v2391
    %2400 = vst [vmem:[#allocation5 + $0x38] sm:$0xff] %v2392
    // Predicated region
    $region30: #{tpu_custom_call.1} parent=1 // pred_check
      _
    $region31: #{tpu_custom_call.1} parent=1 // pred_check_branch
      %2402 = sbr.rel (0) target = $region33
    $region32: #{tpu_custom_call.1} parent=1 // pred_region
      %s2404 = ssub.s32 1024, 1024
      %2405 = vsyncadd [#allocation4], %s2404
      %s2406 = sshll.u32 [#allocation5], 4
      %s2407 = int_to_ptr.vmem [resolvable:$true] %s2406
      %2412 = dma.vmem_to_hbm [thread:$0]  %s2407, 1024, %s6, [#allocation4], 512, 512, 32
    $region33: #{tpu_custom_call.1} parent=1 // pred_fallthru
      _
    // Predicated region
    $region34: #{tpu_custom_call.1} parent=1 // pred_check
      _
    $region35: #{tpu_custom_call.1} parent=1 // pred_check_branch
      %2414 = sbr.rel (0) target = $region37
    $region36: #{tpu_custom_call.1} parent=1 // pred_region
      %2415 = dma.done [#allocation4], 1024
    $region37: #{tpu_custom_call.1} parent=1 // pred_fallthru
      _
    %2416 = vsyncpa [#allocation3], 1
    %2417 = vsyncpa [#allocation4], 1

</llo_original>
